<compile_context>
chip_gen: v6e
topology: v6e:2x2x1
jax: 0.10.0
libtpu: 0.0.40
codegen_flags: <defaults>
</compile_context>

<pallas_src>
import math
from functools import partial

import jax
import jax.numpy as jnp
from jax.experimental import pallas as pl
from jax.experimental.pallas import tpu as pltpu

NEG_INF = -1e30  # cross-batch mask value; exp underflows to exactly 0 in f32


# ------------------------------ fused Pallas kernel ------------------------------

def _fused_attention_kernel(x_ref, w_ref, bias_ref, rpb_ref, o_ref,
                            *, num_heads, head_dim, dim):
    """Fused [q|k|v'] projection + multi-head attention + folded output projection.

    Shapes (all full-array VMEM blocks, no grid):
      x_ref:    (B*N, C)              tokens of all batches, flattened
      w_ref:    (2*AHD + H*dim, C)    rows = [W_q*scale | W_k | W'_0 .. W'_{H-1}]
      bias_ref: (2, 2*AHD + H*dim)    row0 = [q_bias*scale | k_bias | 0], row1 = [b_total | 0]
      rpb_ref:  (H, B*N, B*N)         block-diagonal rel-pos bias, off-diag = -1e30
      o_ref:    (B*N, dim)
    """
    AHD = num_heads * head_dim
    BN = x_ref.shape[0]

    x = x_ref[...]                                  # (B*N, C) f32
    w = w_ref[...]                                  # (2*AHD + H*dim, C)
    bp = bias_ref[...]                              # (2, 2*AHD + H*dim)
    rpb = rpb_ref[...]                              # (H, B*N, B*N), loaded once

    # Single batched, lane-dense projection for all batches and all of [q*scale | k | v'].
    proj = jax.lax.dot_general(
        x, w, dimension_numbers=(((1,), (1,)), ((), ())),
        preferred_element_type=jnp.float32) + bp[0:1, :]          # (B*N, 2*AHD + H*dim)

    acc = jnp.zeros((BN, dim), jnp.float32)
    for h in range(num_heads):                       # static unroll (H is tiny)
        q = proj[:, h * head_dim:(h + 1) * head_dim]               # (B*N, Dh), pre-scaled
        k = proj[:, AHD + h * head_dim:AHD + (h + 1) * head_dim]   # (B*N, Dh)

        # scores + block-diagonal rel-pos bias (cross-batch entries get -1e30)
        s = jax.lax.dot_general(
            q, k, dimension_numbers=(((1,), (1,)), ((), ())),
            preferred_element_type=jnp.float32) + rpb[h]           # (B*N, B*N)

        # softmax along keys (EUP exp + EUP approx reciprocal); masked cols -> exactly 0
        m = jnp.max(s, axis=-1, keepdims=True)
        p = jnp.exp(s - m)
        p = p * pl.reciprocal(jnp.sum(p, axis=-1, keepdims=True), approx=True)

        # folded value/proj: vp = x @ (W_proj_h @ W_v_h)^T, lane-dense (B*N, dim)
        vp = proj[:, 2 * AHD + h * dim:2 * AHD + (h + 1) * dim]
        acc = acc + jnp.dot(p, vp, preferred_element_type=jnp.float32)

    # single lane-dense store of the whole output + fused bias (b_proj + W_proj @ v_bias)
    o_ref[...] = (acc + bp[1:2, :dim]).astype(o_ref.dtype)


def fused_custom_attention(x, w_all, bias_pack, rpb_masked, *, num_heads, head_dim, dim):
    B, N, C = x.shape
    vmem = pl.BlockSpec(memory_space=pltpu.MemorySpace.VMEM)
    out = pl.pallas_call(
        partial(_fused_attention_kernel,
                num_heads=num_heads, head_dim=head_dim, dim=dim),
        out_shape=jax.ShapeDtypeStruct((B * N, dim), jnp.float32),
        in_specs=[vmem] * 4,
        out_specs=vmem,
    )(x.reshape(B * N, C), w_all, bias_pack, rpb_masked)   # HBM reshape is free (metadata)
    return out.reshape(B, N, dim)


# ------------------------------ parameter glue ------------------------------

def make_relative_position_index(window_size):
    Wh, Ww = window_size
    M = Wh * Ww
    num_rel = (2 * Wh - 1) * (2 * Ww - 1) + 3
    coords_h = jnp.arange(Wh)
    coords_w = jnp.arange(Ww)
    coords = jnp.stack(jnp.meshgrid(coords_h, coords_w, indexing="ij"))   # (2, Wh, Ww)
    coords_flatten = coords.reshape(2, M)                                 # (2, M)
    rel = coords_flatten[:, :, None] - coords_flatten[:, None, :]         # (2, M, M)
    rel = jnp.transpose(rel, (1, 2, 0))                                   # (M, M, 2)
    rc0 = (rel[..., 0] + (Wh - 1)) * (2 * Ww - 1)
    rc1 = rel[..., 1] + (Ww - 1)
    rel_sum = rc0 + rc1                                                   # (M, M)
    idx = jnp.zeros((M + 1, M + 1), dtype=jnp.int32)
    idx = idx.at[1:, 1:].set(rel_sum.astype(jnp.int32))
    idx = idx.at[0, :].set(num_rel - 3)
    idx = idx.at[:, 0].set(num_rel - 2)
    idx = idx.at[0, 0].set(num_rel - 1)
    return idx, num_rel


def precompute_rel_pos_bias(table, idx, num_heads, n_prompts):
    """(num_rel, H) table + (Mw+1, Mw+1) index -> (H, N, N) bias. Params-only constant."""
    Mw1 = idx.shape[0]
    rpb = table[idx.reshape(-1)].reshape(Mw1, Mw1, num_heads).transpose(2, 0, 1)
    if n_prompts > 0:
        rpb = jnp.pad(rpb, ((0, 0), (n_prompts, 0), (n_prompts, 0)))
    return rpb.astype(jnp.float32)                                        # (H, N, N)


def make_masked_bias(bias_hnn, batch):
    """(H, N, N) -> (H, B*N, B*N) block-diagonal bias; cross-batch entries = -1e30."""
    H, N, _ = bias_hnn.shape
    big = jnp.full((H, batch * N, batch * N), NEG_INF, jnp.float32)
    for b in range(batch):
        big = big.at[:, b * N:(b + 1) * N, b * N:(b + 1) * N].set(bias_hnn)
    return big


def prepare_fused_params(params, batch):
    """Fold scale / proj / biases into packed constants (done once, not per forward)."""
    H, Dh = params["num_heads"], params["head_dim"]
    AHD = H * Dh
    w_qkv, w_proj = params["w_qkv"], params["w_proj"]
    dim = w_proj.shape[0]
    scale = Dh ** (-0.5)

    W_q = w_qkv[:AHD] * scale                       # fold softmax scale into weights
    W_k = w_qkv[AHD:2 * AHD]
    W_v = w_qkv[2 * AHD:]
    # per-head folded value/output-projection weights: (dim, C) each
    Wp_heads = [w_proj[:, h * Dh:(h + 1) * Dh] @ W_v[h * Dh:(h + 1) * Dh, :]
                for h in range(H)]
    w_all = jnp.concatenate([W_q, W_k] + Wp_heads, axis=0).astype(jnp.float32)

    width = 2 * AHD + H * dim
    b_total = params["b_proj"] + w_proj @ params["v_bias"]   # softmax rows sum to 1
    bias_pack = jnp.zeros((2, width), jnp.float32)
    bias_pack = bias_pack.at[0, :AHD].set(params["q_bias"] * scale)
    bias_pack = bias_pack.at[0, AHD:2 * AHD].set(params["k_bias"])
    bias_pack = bias_pack.at[1, :dim].set(b_total)

    bias_hnn = precompute_rel_pos_bias(
        params["rel_pos_table"], params["rel_pos_index"], H, params["n_prompts"])

    out = dict(params)
    out.update(dim=dim, w_all=w_all, bias_pack=bias_pack,
               rel_pos_bias_hnn=bias_hnn,
               rpb_masked=make_masked_bias(bias_hnn, batch))   # re-prepare if B changes
    return out


def custom_attention_forward(params, x, rel_pos_bias=None):
    """Mirror of CustomAttention.forward (eval mode, n_tasks=0). Single fused kernel."""
    if rel_pos_bias is None:
        rpb = params["rpb_masked"]
    else:
        rpb = make_masked_bias(params["rel_pos_bias_hnn"] + rel_pos_bias, x.shape[0])
    return fused_custom_attention(
        x, params["w_all"], params["bias_pack"], rpb,
        num_heads=params["num_heads"], head_dim=params["head_dim"], dim=params["dim"])


# ------------------------------- reference ---------------------------------

def reference_forward(params, x, rel_pos_bias=None):
    B, N, C = x.shape
    H, Dh = params["num_heads"], params["head_dim"]
    scale = Dh ** (-0.5)
    qkv_bias = jnp.concatenate(
        [params["q_bias"], params["k_bias"], params["v_bias"]])
    qkv = x @ params["w_qkv"].T + qkv_bias
    qkv = qkv.reshape(B, N, 3, H, Dh).transpose(2, 0, 3, 1, 4)
    q, k, v = qkv[0] * scale, qkv[1], qkv[2]
    attn = jnp.einsum("bhnd,bhmd->bhnm", q, k)
    table = params["rel_pos_table"]
    idx = params["rel_pos_index"]
    Mw1 = idx.shape[0]
    rpb = table[idx.reshape(-1)].reshape(Mw1, Mw1, H).transpose(2, 0, 1)
    if params["n_prompts"] > 0:
        rpb = jnp.pad(rpb, ((0, 0), (params["n_prompts"], 0), (params["n_prompts"], 0)))
    attn = attn + rpb[None]
    if rel_pos_bias is not None:
        attn = attn + rel_pos_bias
    attn = jax.nn.softmax(attn, axis=-1)
    out = jnp.einsum("bhnm,bhmd->bhnd", attn, v)
    out = out.transpose(0, 2, 1, 3).reshape(B, N, H * Dh)
    return out @ params["w_proj"].T + params["b_proj"]


# --------------------------------- main -------------------------------------

if __name__ == "__main__":
    B = 2
    dim = 32
    num_heads = 4
    head_dim = dim // num_heads          # 8
    all_head_dim = head_dim * num_heads  # 32
    window_size = (4, 4)
    n_prompts = 2
    N = window_size[0] * window_size[1] + 1 + n_prompts   # 19

    rel_pos_index, num_rel = make_relative_position_index(window_size)

    key = jax.random.PRNGKey(0)
    k1, k2, k3, k4, k5, k6, kx = jax.random.split(key, 7)
    params = dict(
        num_heads=num_heads,
        head_dim=head_dim,
        n_prompts=n_prompts,
        w_qkv=0.02 * jax.random.normal(k1, (3 * all_head_dim, dim), jnp.float32),
        q_bias=0.02 * jax.random.normal(k2, (all_head_dim,), jnp.float32),
        k_bias=jnp.zeros((all_head_dim,), jnp.float32),   # buffer, always zeros
        v_bias=0.02 * jax.random.normal(k3, (all_head_dim,), jnp.float32),
        rel_pos_table=0.02 * jax.random.normal(k4, (num_rel, num_heads), jnp.float32),
        rel_pos_index=rel_pos_index,
        w_proj=0.02 * jax.random.normal(k5, (dim, all_head_dim), jnp.float32),
        b_proj=0.02 * jax.random.normal(k6, (dim,), jnp.float32),
    )

    # Hoisted params-only precomputation (fold scale/proj/bias, pack buffers) — once.
    params = prepare_fused_params(params, batch=B)

    x = jax.random.normal(kx, (B, N, dim), jnp.float32)

    out = custom_attention_forward(params, x, rel_pos_bias=None)
    out = jax.block_until_ready(out)

    ref = reference_forward(params, x, rel_pos_bias=None)
    assert out.shape == (B, N, dim), out.shape
    assert jnp.allclose(out, ref, atol=1e-4, rtol=1e-4), \
        float(jnp.max(jnp.abs(out - ref)))

    print("KERNEL_OK")
</pallas_src>

<mosaic_0001>
module attributes {stable_mosaic.version = 11 : i64} {
  func.func @_fused_attention_kernel(%arg0: memref<38x32xf32, #tpu.memory_space<vmem>>, %arg1: memref<192x32xf32, #tpu.memory_space<vmem>>, %arg2: memref<2x192xf32, #tpu.memory_space<vmem>>, %arg3: memref<4x38x38xf32, #tpu.memory_space<vmem>>, %arg4: memref<38x32xf32, #tpu.memory_space<vmem>>) attributes {dimension_semantics = [], scalar_prefetch = 0 : i64, scratch_operands = 0 : i64, tpu.core_type = #tpu.core_type<tc>} {
    %c0 = arith.constant 0 : index
    %c0_0 = arith.constant 0 : index
    %0 = vector.load %arg0[%c0, %c0_0] : memref<38x32xf32, #tpu.memory_space<vmem>>, vector<38x32xf32>
    %c0_1 = arith.constant 0 : index
    %c0_2 = arith.constant 0 : index
    %1 = vector.load %arg1[%c0_1, %c0_2] : memref<192x32xf32, #tpu.memory_space<vmem>>, vector<192x32xf32>
    %c0_3 = arith.constant 0 : index
    %c0_4 = arith.constant 0 : index
    %2 = vector.load %arg2[%c0_3, %c0_4] : memref<2x192xf32, #tpu.memory_space<vmem>>, vector<2x192xf32>
    %c0_5 = arith.constant 0 : index
    %c0_6 = arith.constant 0 : index
    %c0_7 = arith.constant 0 : index
    %3 = vector.load %arg3[%c0_5, %c0_6, %c0_7] : memref<4x38x38xf32, #tpu.memory_space<vmem>>, vector<4x38x38xf32>
    %cst = arith.constant dense<0.000000e+00> : vector<38x192xf32>
    %4 = tpu.matmul %0, %1, %cst {dimension_numbers = #tpu.dot_dimension_numbers<[1], [1], [0], [0], [0, 0, 1, 0], [], []>} : vector<38x32xf32>, vector<192x32xf32>, vector<38x192xf32> -> vector<38x192xf32>
    %5 = vector.extract_strided_slice %2 {offsets = [0, 0], sizes = [1, 192], strides = [1, 1]} : vector<2x192xf32> to vector<1x192xf32>
    %6 = vector.broadcast %5 : vector<1x192xf32> to vector<38x192xf32>
    %7 = arith.addf %4, %6 : vector<38x192xf32>
    %cst_8 = arith.constant 0.000000e+00 : f32
    %8 = vector.broadcast %cst_8 : f32 to vector<38x32xf32>
    %9 = vector.extract_strided_slice %7 {offsets = [0, 0], sizes = [38, 8], strides = [1, 1]} : vector<38x192xf32> to vector<38x8xf32>
    %10 = vector.extract_strided_slice %7 {offsets = [0, 32], sizes = [38, 8], strides = [1, 1]} : vector<38x192xf32> to vector<38x8xf32>
    %cst_9 = arith.constant dense<0.000000e+00> : vector<38x38xf32>
    %11 = tpu.matmul %9, %10, %cst_9 {dimension_numbers = #tpu.dot_dimension_numbers<[1], [1], [0], [0], [0, 0, 1, 0], [], []>} : vector<38x8xf32>, vector<38x8xf32>, vector<38x38xf32> -> vector<38x38xf32>
    %12 = vector.extract_strided_slice %3 {offsets = [0, 0, 0], sizes = [1, 38, 38], strides = [1, 1, 1]} : vector<4x38x38xf32> to vector<1x38x38xf32>
    %13 = vector.shape_cast %12 : vector<1x38x38xf32> to vector<38x38xf32>
    %14 = arith.addf %11, %13 : vector<38x38xf32>
    %cst_10 = arith.constant dense<0xFF800000> : vector<38xf32>
    %15 = vector.multi_reduction <maximumf>, %14, %cst_10 [1] : vector<38x38xf32> to vector<38xf32>
    %16 = vector.shape_cast %15 : vector<38xf32> to vector<38x1xf32>
    %17 = vector.broadcast %16 : vector<38x1xf32> to vector<38x38xf32>
    %18 = arith.subf %14, %17 : vector<38x38xf32>
    %19 = math.exp %18 : vector<38x38xf32>
    %cst_11 = arith.constant dense<0.000000e+00> : vector<38xf32>
    %20 = vector.multi_reduction <add>, %19, %cst_11 [1] : vector<38x38xf32> to vector<38xf32>
    %21 = vector.shape_cast %20 : vector<38xf32> to vector<38x1xf32>
    %22 = tpu.reciprocal %21 {approx = true} : vector<38x1xf32> -> vector<38x1xf32>
    %23 = vector.broadcast %22 : vector<38x1xf32> to vector<38x38xf32>
    %24 = arith.mulf %19, %23 : vector<38x38xf32>
    %25 = vector.extract_strided_slice %7 {offsets = [0, 64], sizes = [38, 32], strides = [1, 1]} : vector<38x192xf32> to vector<38x32xf32>
    %cst_12 = arith.constant dense<0.000000e+00> : vector<38x32xf32>
    %26 = tpu.matmul %24, %25, %cst_12 {dimension_numbers = #tpu.dot_dimension_numbers<[1], [0], [0], [1], [0, 0, 1, 1], [], []>} : vector<38x38xf32>, vector<38x32xf32>, vector<38x32xf32> -> vector<38x32xf32>
    %27 = arith.addf %8, %26 : vector<38x32xf32>
    %28 = vector.extract_strided_slice %7 {offsets = [0, 8], sizes = [38, 8], strides = [1, 1]} : vector<38x192xf32> to vector<38x8xf32>
    %29 = vector.extract_strided_slice %7 {offsets = [0, 40], sizes = [38, 8], strides = [1, 1]} : vector<38x192xf32> to vector<38x8xf32>
    %cst_13 = arith.constant dense<0.000000e+00> : vector<38x38xf32>
    %30 = tpu.matmul %28, %29, %cst_13 {dimension_numbers = #tpu.dot_dimension_numbers<[1], [1], [0], [0], [0, 0, 1, 0], [], []>} : vector<38x8xf32>, vector<38x8xf32>, vector<38x38xf32> -> vector<38x38xf32>
    %31 = vector.extract_strided_slice %3 {offsets = [1, 0, 0], sizes = [1, 38, 38], strides = [1, 1, 1]} : vector<4x38x38xf32> to vector<1x38x38xf32>
    %32 = vector.shape_cast %31 : vector<1x38x38xf32> to vector<38x38xf32>
    %33 = arith.addf %30, %32 : vector<38x38xf32>
    %cst_14 = arith.constant dense<0xFF800000> : vector<38xf32>
    %34 = vector.multi_reduction <maximumf>, %33, %cst_14 [1] : vector<38x38xf32> to vector<38xf32>
    %35 = vector.shape_cast %34 : vector<38xf32> to vector<38x1xf32>
    %36 = vector.broadcast %35 : vector<38x1xf32> to vector<38x38xf32>
    %37 = arith.subf %33, %36 : vector<38x38xf32>
    %38 = math.exp %37 : vector<38x38xf32>
    %cst_15 = arith.constant dense<0.000000e+00> : vector<38xf32>
    %39 = vector.multi_reduction <add>, %38, %cst_15 [1] : vector<38x38xf32> to vector<38xf32>
    %40 = vector.shape_cast %39 : vector<38xf32> to vector<38x1xf32>
    %41 = tpu.reciprocal %40 {approx = true} : vector<38x1xf32> -> vector<38x1xf32>
    %42 = vector.broadcast %41 : vector<38x1xf32> to vector<38x38xf32>
    %43 = arith.mulf %38, %42 : vector<38x38xf32>
    %44 = vector.extract_strided_slice %7 {offsets = [0, 96], sizes = [38, 32], strides = [1, 1]} : vector<38x192xf32> to vector<38x32xf32>
    %cst_16 = arith.constant dense<0.000000e+00> : vector<38x32xf32>
    %45 = tpu.matmul %43, %44, %cst_16 {dimension_numbers = #tpu.dot_dimension_numbers<[1], [0], [0], [1], [0, 0, 1, 1], [], []>} : vector<38x38xf32>, vector<38x32xf32>, vector<38x32xf32> -> vector<38x32xf32>
    %46 = arith.addf %27, %45 : vector<38x32xf32>
    %47 = vector.extract_strided_slice %7 {offsets = [0, 16], sizes = [38, 8], strides = [1, 1]} : vector<38x192xf32> to vector<38x8xf32>
    %48 = vector.extract_strided_slice %7 {offsets = [0, 48], sizes = [38, 8], strides = [1, 1]} : vector<38x192xf32> to vector<38x8xf32>
    %cst_17 = arith.constant dense<0.000000e+00> : vector<38x38xf32>
    %49 = tpu.matmul %47, %48, %cst_17 {dimension_numbers = #tpu.dot_dimension_numbers<[1], [1], [0], [0], [0, 0, 1, 0], [], []>} : vector<38x8xf32>, vector<38x8xf32>, vector<38x38xf32> -> vector<38x38xf32>
    %50 = vector.extract_strided_slice %3 {offsets = [2, 0, 0], sizes = [1, 38, 38], strides = [1, 1, 1]} : vector<4x38x38xf32> to vector<1x38x38xf32>
    %51 = vector.shape_cast %50 : vector<1x38x38xf32> to vector<38x38xf32>
    %52 = arith.addf %49, %51 : vector<38x38xf32>
    %cst_18 = arith.constant dense<0xFF800000> : vector<38xf32>
    %53 = vector.multi_reduction <maximumf>, %52, %cst_18 [1] : vector<38x38xf32> to vector<38xf32>
    %54 = vector.shape_cast %53 : vector<38xf32> to vector<38x1xf32>
    %55 = vector.broadcast %54 : vector<38x1xf32> to vector<38x38xf32>
    %56 = arith.subf %52, %55 : vector<38x38xf32>
    %57 = math.exp %56 : vector<38x38xf32>
    %cst_19 = arith.constant dense<0.000000e+00> : vector<38xf32>
    %58 = vector.multi_reduction <add>, %57, %cst_19 [1] : vector<38x38xf32> to vector<38xf32>
    %59 = vector.shape_cast %58 : vector<38xf32> to vector<38x1xf32>
    %60 = tpu.reciprocal %59 {approx = true} : vector<38x1xf32> -> vector<38x1xf32>
    %61 = vector.broadcast %60 : vector<38x1xf32> to vector<38x38xf32>
    %62 = arith.mulf %57, %61 : vector<38x38xf32>
    %63 = vector.extract_strided_slice %7 {offsets = [0, 128], sizes = [38, 32], strides = [1, 1]} : vector<38x192xf32> to vector<38x32xf32>
    %cst_20 = arith.constant dense<0.000000e+00> : vector<38x32xf32>
    %64 = tpu.matmul %62, %63, %cst_20 {dimension_numbers = #tpu.dot_dimension_numbers<[1], [0], [0], [1], [0, 0, 1, 1], [], []>} : vector<38x38xf32>, vector<38x32xf32>, vector<38x32xf32> -> vector<38x32xf32>
    %65 = arith.addf %46, %64 : vector<38x32xf32>
    %66 = vector.extract_strided_slice %7 {offsets = [0, 24], sizes = [38, 8], strides = [1, 1]} : vector<38x192xf32> to vector<38x8xf32>
    %67 = vector.extract_strided_slice %7 {offsets = [0, 56], sizes = [38, 8], strides = [1, 1]} : vector<38x192xf32> to vector<38x8xf32>
    %cst_21 = arith.constant dense<0.000000e+00> : vector<38x38xf32>
    %68 = tpu.matmul %66, %67, %cst_21 {dimension_numbers = #tpu.dot_dimension_numbers<[1], [1], [0], [0], [0, 0, 1, 0], [], []>} : vector<38x8xf32>, vector<38x8xf32>, vector<38x38xf32> -> vector<38x38xf32>
    %69 = vector.extract_strided_slice %3 {offsets = [3, 0, 0], sizes = [1, 38, 38], strides = [1, 1, 1]} : vector<4x38x38xf32> to vector<1x38x38xf32>
    %70 = vector.shape_cast %69 : vector<1x38x38xf32> to vector<38x38xf32>
    %71 = arith.addf %68, %70 : vector<38x38xf32>
    %cst_22 = arith.constant dense<0xFF800000> : vector<38xf32>
    %72 = vector.multi_reduction <maximumf>, %71, %cst_22 [1] : vector<38x38xf32> to vector<38xf32>
    %73 = vector.shape_cast %72 : vector<38xf32> to vector<38x1xf32>
    %74 = vector.broadcast %73 : vector<38x1xf32> to vector<38x38xf32>
    %75 = arith.subf %71, %74 : vector<38x38xf32>
    %76 = math.exp %75 : vector<38x38xf32>
    %cst_23 = arith.constant dense<0.000000e+00> : vector<38xf32>
    %77 = vector.multi_reduction <add>, %76, %cst_23 [1] : vector<38x38xf32> to vector<38xf32>
    %78 = vector.shape_cast %77 : vector<38xf32> to vector<38x1xf32>
    %79 = tpu.reciprocal %78 {approx = true} : vector<38x1xf32> -> vector<38x1xf32>
    %80 = vector.broadcast %79 : vector<38x1xf32> to vector<38x38xf32>
    %81 = arith.mulf %76, %80 : vector<38x38xf32>
    %82 = vector.extract_strided_slice %7 {offsets = [0, 160], sizes = [38, 32], strides = [1, 1]} : vector<38x192xf32> to vector<38x32xf32>
    %cst_24 = arith.constant dense<0.000000e+00> : vector<38x32xf32>
    %83 = tpu.matmul %81, %82, %cst_24 {dimension_numbers = #tpu.dot_dimension_numbers<[1], [0], [0], [1], [0, 0, 1, 1], [], []>} : vector<38x38xf32>, vector<38x32xf32>, vector<38x32xf32> -> vector<38x32xf32>
    %84 = arith.addf %65, %83 : vector<38x32xf32>
    %85 = vector.extract_strided_slice %2 {offsets = [1, 0], sizes = [1, 32], strides = [1, 1]} : vector<2x192xf32> to vector<1x32xf32>
    %86 = vector.broadcast %85 : vector<1x32xf32> to vector<38x32xf32>
    %87 = arith.addf %84, %86 : vector<38x32xf32>
    %c0_25 = arith.constant 0 : index
    %c0_26 = arith.constant 0 : index
    %88 = vector.load %arg4[%c0_25, %c0_26] : memref<38x32xf32, #tpu.memory_space<vmem>>, vector<38x32xf32>
    tpu.vector_store %arg4[%c0_25, %c0_26], %87 {strides = array<i32>} : memref<38x32xf32, #tpu.memory_space<vmem>>, vector<38x32xf32>,
    return
  }
}

</mosaic_0001>

<llo_original>
// kernel: tpu_custom_call.1
$region0: #{tpu_custom_call.1}
  #allocation0 [shape = 'u32[]', space=smem, size = 0x4, offset = 0x4, fixed_abs, tag = 'smem constant byte address 0x4 - core index']
  #allocation1 [shape = 'u32[144,128]{1,0:T(1,128)}', space=vmem, size = 0x12000, scoped, tag = 'internal scratch']
  %s0 = inlined_call_operand.vmem [shape: f32[38,32], index: 0, kind: input, shape index: {}]
  %s1 = inlined_call_operand.vmem [shape: f32[192,32], index: 1, kind: input, shape index: {}]
  %s2 = inlined_call_operand.vmem [shape: f32[2,192], index: 2, kind: input, shape index: {}]
  %s3 = inlined_call_operand.vmem [shape: f32[4,38,38], index: 3, kind: input, shape index: {}]
  %s4 = inlined_call_operand.vmem [shape: f32[38,32], index: 4, kind: output, shape index: {}]
  %s5 = sld [smem:[#allocation0]]
  $region26: #{tpu_custom_call.1} parent=0
    _
  %s7 = ssub.s32 1, %s5
  %s8 = scalar_select 0, %s7, %s5
  // Predicated region
  $region2: #{tpu_custom_call.1} parent=0 // pred_check
    _
  $region3: #{tpu_custom_call.1} parent=0 // pred_check_branch
    %10 = sbr.rel (0) target = $region5
  $region4: #{tpu_custom_call.1} parent=0 // pred_region
    _
  $region5: #{tpu_custom_call.1} parent=0 // pred_fallthru
    _
  // Predicated region
  $region6: #{tpu_custom_call.1} parent=0 // pred_check
    _
  $region7: #{tpu_custom_call.1} parent=0 // pred_check_branch
    %12 = sbr.rel (0) target = $region9
  $region8: #{tpu_custom_call.1} parent=0 // pred_region
    _
  $region9: #{tpu_custom_call.1} parent=0 // pred_fallthru
    _
  // Predicated region
  $region10: #{tpu_custom_call.1} parent=0 // pred_check
    _
  $region11: #{tpu_custom_call.1} parent=0 // pred_check_branch
    %14 = sbr.rel (0) target = $region13
  $region12: #{tpu_custom_call.1} parent=0 // pred_region
    _
  $region13: #{tpu_custom_call.1} parent=0 // pred_fallthru
    _
  // Predicated region
  $region14: #{tpu_custom_call.1} parent=0 // pred_check
    _
  $region15: #{tpu_custom_call.1} parent=0 // pred_check_branch
    %16 = sbr.rel (0) target = $region17
  $region16: #{tpu_custom_call.1} parent=0 // pred_region
    _
  $region17: #{tpu_custom_call.1} parent=0 // pred_fallthru
    _
  %v17 = vld [vmem:[%s0] sm:$0xff]
  %v18 = vld [vmem:[%s0 + $0x8] sm:$0xff]
  %v19 = vld [vmem:[%s0 + $0x10] sm:$0xff]
  %v20 = vld [vmem:[%s0 + $0x18] sm:$0xff]
  %v21 = vld [vmem:[%s0 + $0x20] sm:$0x3f]
  %v22 = vld [vmem:[%s1] sm:$0xff]
  %v23 = vld [vmem:[%s1 + $0x8] sm:$0xff]
  %v24 = vld [vmem:[%s1 + $0x10] sm:$0xff]
  %v25 = vld [vmem:[%s1 + $0x18] sm:$0xff]
  %v26 = vld [vmem:[%s1 + $0x20] sm:$0xff]
  %v27 = vld [vmem:[%s1 + $0x28] sm:$0xff]
  %v28 = vld [vmem:[%s1 + $0x30] sm:$0xff]
  %v29 = vld [vmem:[%s1 + $0x38] sm:$0xff]
  %v30 = vld [vmem:[%s1 + $0x40] sm:$0xff]
  %v31 = vld [vmem:[%s1 + $0x48] sm:$0xff]
  %v32 = vld [vmem:[%s1 + $0x50] sm:$0xff]
  %v33 = vld [vmem:[%s1 + $0x58] sm:$0xff]
  %v34 = vld [vmem:[%s1 + $0x60] sm:$0xff]
  %v35 = vld [vmem:[%s1 + $0x68] sm:$0xff]
  %v36 = vld [vmem:[%s1 + $0x70] sm:$0xff]
  %v37 = vld [vmem:[%s1 + $0x78] sm:$0xff]
  %v38 = vld [vmem:[%s1 + $0x80] sm:$0xff]
  %v39 = vld [vmem:[%s1 + $0x88] sm:$0xff]
  %v40 = vld [vmem:[%s1 + $0x90] sm:$0xff]
  %v41 = vld [vmem:[%s1 + $0x98] sm:$0xff]
  %v42 = vld [vmem:[%s1 + $0xa0] sm:$0xff]
  %v43 = vld [vmem:[%s1 + $0xa8] sm:$0xff]
  %v44 = vld [vmem:[%s1 + $0xb0] sm:$0xff]
  %v45 = vld [vmem:[%s1 + $0xb8] sm:$0xff]
  %v46 = vld [vmem:[%s2] sm:$0xf]
  %v47 = vld [vmem:[%s3] sm:$0xff]
  %v48 = vld [vmem:[%s3 + $0x8] sm:$0xff]
  %v49 = vld [vmem:[%s3 + $0x10] sm:$0xff]
  %v50 = vld [vmem:[%s3 + $0x18] sm:$0xff]
  %v51 = vld [vmem:[%s3 + $0x20] sm:$0x3f]
  %v52 = vld [vmem:[%s3 + $0x28] sm:$0xff]
  %v53 = vld [vmem:[%s3 + $0x30] sm:$0xff]
  %v54 = vld [vmem:[%s3 + $0x38] sm:$0xff]
  %v55 = vld [vmem:[%s3 + $0x40] sm:$0xff]
  %v56 = vld [vmem:[%s3 + $0x48] sm:$0x3f]
  %v57 = vld [vmem:[%s3 + $0x50] sm:$0xff]
  %v58 = vld [vmem:[%s3 + $0x58] sm:$0xff]
  %v59 = vld [vmem:[%s3 + $0x60] sm:$0xff]
  %v60 = vld [vmem:[%s3 + $0x68] sm:$0xff]
  %v61 = vld [vmem:[%s3 + $0x70] sm:$0x3f]
  %v62 = vld [vmem:[%s3 + $0x78] sm:$0xff]
  %v63 = vld [vmem:[%s3 + $0x80] sm:$0xff]
  %v64 = vld [vmem:[%s3 + $0x88] sm:$0xff]
  %v65 = vld [vmem:[%s3 + $0x90] sm:$0xff]
  %v66 = vld [vmem:[%s3 + $0x98] sm:$0x3f]
  %v68 = vlaneseq
  %v69 = vshrl.u32 %v68, 7
  %v70 = vsub.s32 0, %v69
  %v71 = vrot.slane %v46, %v70
  %v72 = vlaneseq
  %v73 = vshrl.u32 %v72, 7
  %v74 = vsub.s32 2, %v73
  %v75 = vrot.slane %v46, %v74
  %v78 = vlaneseq
  %v79 = vshrl.u32 %v78, 7
  %v80 = vsub.s32 0, %v79
  %v81 = vrot.slane %v71, %v80
  %v82 = vlaneseq
  %v83 = vshrl.u32 %v82, 7
  %v84 = vsub.s32 0, %v83
  %v85 = vrot.slane %v75, %v84
  %vm86 = vcmask 261120
  %v88 = vsel %vm86, %v17, 0
  %v91 = vsel %vm86, %v18, 0
  %v94 = vsel %vm86, %v19, 0
  %v97 = vsel %vm86, %v20, 0
  %v100 = vsel %vm86, %v21, 0
  %v103 = vsel %vm86, %v22, 0
  %v106 = vsel %vm86, %v23, 0
  %v109 = vsel %vm86, %v24, 0
  %v112 = vsel %vm86, %v25, 0
  %v115 = vsel %vm86, %v26, 0
  %v118 = vsel %vm86, %v27, 0
  %v121 = vsel %vm86, %v28, 0
  %v124 = vsel %vm86, %v29, 0
  %v127 = vsel %vm86, %v30, 0
  %v130 = vsel %vm86, %v31, 0
  %v133 = vsel %vm86, %v32, 0
  %v136 = vsel %vm86, %v33, 0
  %v139 = vsel %vm86, %v34, 0
  %v142 = vsel %vm86, %v35, 0
  %v145 = vsel %vm86, %v36, 0
  %v148 = vsel %vm86, %v37, 0
  %v151 = vsel %vm86, %v38, 0
  %v154 = vsel %vm86, %v39, 0
  %v157 = vsel %vm86, %v40, 0
  %v160 = vsel %vm86, %v41, 0
  %v163 = vsel %vm86, %v42, 0
  %v166 = vsel %vm86, %v43, 0
  %v169 = vsel %vm86, %v44, 0
  %v172 = vsel %vm86, %v45, 0
  %174 = vmatprep.subr.mxu0 0.0
  %175 = vmatpush1.xpose.msra.mxu0 %v148
  %176 = vmatprep.subr.mxu0 0.0
  %177 = vmatpush1.xpose.msra.mxu0 %v145
  %178 = vmatprep.subr.mxu0 0.0
  %179 = vmatpush1.xpose.msra.mxu0 %v142
  %180 = vmatprep.subr.mxu0 0.0
  %181 = vmatpush1.xpose.msra.mxu0 %v139
  %182 = vmatprep.subr.mxu0 0.0
  %183 = vmatpush1.xpose.msra.mxu0 %v136
  %184 = vmatprep.subr.mxu0 0.0
  %185 = vmatpush1.xpose.msra.mxu0 %v133
  %186 = vmatprep.subr.mxu0 0.0
  %187 = vmatpush1.xpose.msra.mxu0 %v130
  %188 = vmatprep.subr.mxu0 0.0
  %189 = vmatpush1.xpose.msra.mxu0 %v127
  %190 = vmatprep.subr.mxu0 0.0
  %191 = vmatpush1.xpose.msra.mxu0 %v124
  %192 = vmatprep.subr.mxu0 0.0
  %193 = vmatpush1.xpose.msra.mxu0 %v121
  %194 = vmatprep.subr.mxu0 0.0
  %195 = vmatpush1.xpose.msra.mxu0 %v118
  %196 = vmatprep.subr.mxu0 0.0
  %197 = vmatpush1.xpose.msra.mxu0 %v115
  %198 = vmatprep.subr.mxu0 0.0
  %199 = vmatpush1.xpose.msra.mxu0 %v112
  %200 = vmatprep.subr.mxu0 0.0
  %201 = vmatpush1.xpose.msra.mxu0 %v109
  %202 = vmatprep.subr.mxu0 0.0
  %203 = vmatpush1.xpose.msra.mxu0 %v106
  %204 = vmatprep.subr.mxu0 0.0
  %205 = vmatpush1.xpose.msra.mxu0 %v103
  %206 = vmatprep.subr.mxu0 0.0
  %207 = vmatpush2.xpose.msra.mxu0 0.0
  %208 = vmatprep.subr.mxu0 0.0
  %209 = vmatpush2.xpose.msra.mxu0 0.0
  %210 = vmatprep.subr.mxu0 0.0
  %211 = vmatpush2.xpose.msra.mxu0 0.0
  %212 = vmatprep.subr.mxu0 0.0
  %213 = vmatpush2.xpose.msra.mxu0 0.0
  %214 = vmatprep.subr.mxu0 0.0
  %215 = vmatpush2.xpose.msra.mxu0 0.0
  %216 = vmatprep.subr.mxu0 0.0
  %217 = vmatpush2.xpose.msra.mxu0 0.0
  %218 = vmatprep.subr.mxu0 0.0
  %219 = vmatpush2.xpose.msra.mxu0 0.0
  %220 = vmatprep.subr.mxu0 0.0
  %221 = vmatpush2.xpose.msra.mxu0 0.0
  %222 = vmatprep.subr.mxu0 0.0
  %223 = vmatpush2.xpose.msra.mxu0 %v172
  %224 = vmatprep.subr.mxu0 0.0
  %225 = vmatpush2.xpose.msra.mxu0 %v169
  %226 = vmatprep.subr.mxu0 0.0
  %227 = vmatpush2.xpose.msra.mxu0 %v166
  %228 = vmatprep.subr.mxu0 0.0
  %229 = vmatpush2.xpose.msra.mxu0 %v163
  %230 = vmatprep.subr.mxu0 0.0
  %231 = vmatpush2.xpose.msra.mxu0 %v160
  %232 = vmatprep.subr.mxu0 0.0
  %233 = vmatpush2.xpose.msra.mxu0 %v157
  %234 = vmatprep.subr.mxu0 0.0
  %235 = vmatpush2.xpose.msra.mxu0 %v154
  %236 = vmatprep.subr.mxu0 0.0
  %237 = vmatpush2.xpose.msra.mxu0 %v151
  %238 = vmatprep.mubr.f32.mxu0 0.0
  %239 = vmatmul.mubr.f32.gmra.mxu0 %v88
  %v240 = vpop.f32.mrf.mxu0
  %v241 = vadd.f32 %v81, %v240
  %v242 = vpop.f32.mrf.mxu0
  %v243 = vadd.f32 %v85, %v242
  %244 = vmatprep.mubr.f32.mxu0 0.0
  %245 = vmatmul.mubr.f32.gmra.mxu0 %v91
  %v246 = vpop.f32.mrf.mxu0
  %v247 = vadd.f32 %v81, %v246
  %v248 = vpop.f32.mrf.mxu0
  %v249 = vadd.f32 %v85, %v248
  %250 = vmatprep.mubr.f32.mxu0 0.0
  %251 = vmatmul.mubr.f32.gmra.mxu0 %v94
  %v252 = vpop.f32.mrf.mxu0
  %v253 = vadd.f32 %v81, %v252
  %v254 = vpop.f32.mrf.mxu0
  %v255 = vadd.f32 %v85, %v254
  %256 = vmatprep.mubr.f32.mxu0 0.0
  %257 = vmatmul.mubr.f32.gmra.mxu0 %v97
  %v258 = vpop.f32.mrf.mxu0
  %v259 = vadd.f32 %v81, %v258
  %v260 = vpop.f32.mrf.mxu0
  %v261 = vadd.f32 %v85, %v260
  %262 = vmatprep.mubr.f32.mxu0 0.0
  %263 = vmatmul.mubr.f32.gmra.mxu0 %v100
  %v264 = vpop.f32.mrf.mxu0
  %v265 = vadd.f32 %v81, %v264
  %v266 = vpop.f32.mrf.mxu0
  %v267 = vadd.f32 %v85, %v266
  %268 = vdwg.mxu0
  %274 = vrot.lane.b32.xlu0 %v241, 96
  %v275 = vpop.permute.xlu0 %274
  %276 = vrot.lane.b32.xlu0 %v247, 96
  %v277 = vpop.permute.xlu0 %276
  %278 = vrot.lane.b32.xlu0 %v253, 96
  %v279 = vpop.permute.xlu0 %278
  %280 = vrot.lane.b32.xlu0 %v259, 96
  %v281 = vpop.permute.xlu0 %280
  %282 = vrot.lane.b32.xlu0 %v265, 96
  %v283 = vpop.permute.xlu0 %282
  %vm284 = vcmask 64512
  %v285 = vsel %vm284, %v241, 0
  %v287 = vsel %vm284, %v247, 0
  %v289 = vsel %vm284, %v253, 0
  %v291 = vsel %vm284, %v259, 0
  %v293 = vsel %vm284, %v265, 0
  %v295 = vsel %vm284, %v275, 0
  %v297 = vsel %vm284, %v277, 0
  %v299 = vsel %vm284, %v279, 0
  %v301 = vsel %vm284, %v281, 0
  %v303 = vsel %vm284, %v283, 0
  %305 = vmatprep.subr.mxu0 0.0
  %306 = vmatpush1.xpose.msra.mxu0 0.0
  %307 = vmatprep.subr.mxu0 0.0
  %308 = vmatpush1.xpose.msra.mxu0 0.0
  %309 = vmatprep.subr.mxu0 0.0
  %310 = vmatpush1.xpose.msra.mxu0 0.0
  %311 = vmatprep.subr.mxu0 0.0
  %312 = vmatpush1.xpose.msra.mxu0 0.0
  %313 = vmatprep.subr.mxu0 0.0
  %314 = vmatpush1.xpose.msra.mxu0 0.0
  %315 = vmatprep.subr.mxu0 0.0
  %316 = vmatpush1.xpose.msra.mxu0 0.0
  %317 = vmatprep.subr.mxu0 0.0
  %318 = vmatpush1.xpose.msra.mxu0 0.0
  %319 = vmatprep.subr.mxu0 0.0
  %320 = vmatpush1.xpose.msra.mxu0 0.0
  %321 = vmatprep.subr.mxu0 0.0
  %322 = vmatpush1.xpose.msra.mxu0 0.0
  %323 = vmatprep.subr.mxu0 0.0
  %324 = vmatpush1.xpose.msra.mxu0 0.0
  %325 = vmatprep.subr.mxu0 0.0
  %326 = vmatpush1.xpose.msra.mxu0 0.0
  %327 = vmatprep.subr.mxu0 0.0
  %328 = vmatpush1.xpose.msra.mxu0 %v303
  %329 = vmatprep.subr.mxu0 0.0
  %330 = vmatpush1.xpose.msra.mxu0 %v301
  %331 = vmatprep.subr.mxu0 0.0
  %332 = vmatpush1.xpose.msra.mxu0 %v299
  %333 = vmatprep.subr.mxu0 0.0
  %334 = vmatpush1.xpose.msra.mxu0 %v297
  %335 = vmatprep.subr.mxu0 0.0
  %336 = vmatpush1.xpose.msra.mxu0 %v295
  %337 = vmatprep.subr.mxu0 0.0
  %338 = vmatpush2.xpose.msra.mxu0 0.0
  %339 = vmatprep.subr.mxu0 0.0
  %340 = vmatpush2.xpose.msra.mxu0 0.0
  %341 = vmatprep.subr.mxu0 0.0
  %342 = vmatpush2.xpose.msra.mxu0 0.0
  %343 = vmatprep.subr.mxu0 0.0
  %344 = vmatpush2.xpose.msra.mxu0 0.0
  %345 = vmatprep.subr.mxu0 0.0
  %346 = vmatpush2.xpose.msra.mxu0 0.0
  %347 = vmatprep.subr.mxu0 0.0
  %348 = vmatpush2.xpose.msra.mxu0 0.0
  %349 = vmatprep.subr.mxu0 0.0
  %350 = vmatpush2.xpose.msra.mxu0 0.0
  %351 = vmatprep.subr.mxu0 0.0
  %352 = vmatpush2.xpose.msra.mxu0 0.0
  %353 = vmatprep.subr.mxu0 0.0
  %354 = vmatpush2.xpose.msra.mxu0 0.0
  %355 = vmatprep.subr.mxu0 0.0
  %356 = vmatpush2.xpose.msra.mxu0 0.0
  %357 = vmatprep.subr.mxu0 0.0
  %358 = vmatpush2.xpose.msra.mxu0 0.0
  %359 = vmatprep.subr.mxu0 0.0
  %360 = vmatpush2.xpose.msra.mxu0 0.0
  %361 = vmatprep.subr.mxu0 0.0
  %362 = vmatpush2.xpose.msra.mxu0 0.0
  %363 = vmatprep.subr.mxu0 0.0
  %364 = vmatpush2.xpose.msra.mxu0 0.0
  %365 = vmatprep.subr.mxu0 0.0
  %366 = vmatpush2.xpose.msra.mxu0 0.0
  %367 = vmatprep.subr.mxu0 0.0
  %368 = vmatpush2.xpose.msra.mxu0 0.0
  %369 = vmatprep.mubr.f32.mxu0 0.0
  %370 = vmatmul.mubr.f32.gmra.mxu0 %v285
  %v371 = vpop.f32.mrf.mxu0
  %v372 = vadd.f32 %v47, %v371
  %v373 = vpop.f32.mrf.mxu0
  %374 = vmatprep.mubr.f32.mxu0 0.0
  %375 = vmatmul.mubr.f32.gmra.mxu0 %v287
  %v376 = vpop.f32.mrf.mxu0
  %v377 = vadd.f32 %v48, %v376
  %v378 = vpop.f32.mrf.mxu0
  %379 = vmatprep.mubr.f32.mxu0 0.0
  %380 = vmatmul.mubr.f32.gmra.mxu0 %v289
  %v381 = vpop.f32.mrf.mxu0
  %v382 = vadd.f32 %v49, %v381
  %v383 = vpop.f32.mrf.mxu0
  %384 = vmatprep.mubr.f32.mxu0 0.0
  %385 = vmatmul.mubr.f32.gmra.mxu0 %v291
  %v386 = vpop.f32.mrf.mxu0
  %v387 = vadd.f32 %v50, %v386
  %v388 = vpop.f32.mrf.mxu0
  %389 = vmatprep.mubr.f32.mxu0 0.0
  %390 = vmatmul.mubr.f32.gmra.mxu0 %v293
  %v391 = vpop.f32.mrf.mxu0
  %v392 = vadd.f32 %v51, %v391
  %v393 = vpop.f32.mrf.mxu0
  %394 = vdwg.mxu0
  %vm395 = vcmask 310272
  %v396 = vsel %vm395, %v372, -inf
  %397 = vmax.xlane.f32.xlu0 %v396
  %v398 = vpop.xlane.xlu0 %397
  %v399 = vsel %vm395, %v377, -inf
  %400 = vmax.xlane.f32.xlu0 %v399
  %v401 = vpop.xlane.xlu0 %400
  %v402 = vsel %vm395, %v382, -inf
  %403 = vmax.xlane.f32.xlu0 %v402
  %v404 = vpop.xlane.xlu0 %403
  %v405 = vsel %vm395, %v387, -inf
  %406 = vmax.xlane.f32.xlu0 %v405
  %v407 = vpop.xlane.xlu0 %406
  %vm408 = vcmask 308224
  %v409 = vsel %vm408, %v392, -inf
  %410 = vmax.xlane.f32.xlu0 %v409
  %v411 = vpop.xlane.xlu0 %410
  %v412 = vsub.f32 %v372, %v398
  %v413 = vsub.f32 %v377, %v401
  %v414 = vsub.f32 %v382, %v404
  %v415 = vsub.f32 %v387, %v407
  %v416 = vsub.f32 %v392, %v411
  %v417 = vmul.f32 %v412, 1.442695
  %v418 = vpow.pop %v417
  %v419 = vmul.f32 %v413, 1.442695
  %v420 = vpow.pop %v419
  %v421 = vmul.f32 %v414, 1.442695
  %v422 = vpow.pop %v421
  %v423 = vmul.f32 %v415, 1.442695
  %v424 = vpow.pop %v423
  %v425 = vmul.f32 %v416, 1.442695
  %v426 = vpow.pop %v425
  %v427 = vsel %vm395, %v418, 0.0
  %428 = vadd.xlane.f32.xlu0 %v427
  %v429 = vpop.xlane.xlu0 %428
  %v430 = vsel %vm395, %v420, 0.0
  %431 = vadd.xlane.f32.xlu0 %v430
  %v432 = vpop.xlane.xlu0 %431
  %v433 = vsel %vm395, %v422, 0.0
  %434 = vadd.xlane.f32.xlu0 %v433
  %v435 = vpop.xlane.xlu0 %434
  %v436 = vsel %vm395, %v424, 0.0
  %437 = vadd.xlane.f32.xlu0 %v436
  %v438 = vpop.xlane.xlu0 %437
  %v439 = vsel %vm408, %v426, 0.0
  %440 = vadd.xlane.f32.xlu0 %v439
  %v441 = vpop.xlane.xlu0 %440
  %v442 = vrcp.pop %v429
  %v443 = vrcp.pop %v432
  %v444 = vrcp.pop %v435
  %v445 = vrcp.pop %v438
  %v446 = vrcp.pop %v441
  %v447 = vmul.f32 %v418, %v442
  %v448 = vmul.f32 %v420, %v443
  %v449 = vmul.f32 %v422, %v444
  %v450 = vmul.f32 %v424, %v445
  %v451 = vmul.f32 %v426, %v446
  %452 = vrot.lane.b32.xlu0 %v241, 120
  %v453 = vpop.permute.xlu0 %452
  %454 = vrot.lane.b32.xlu0 %v247, 120
  %v455 = vpop.permute.xlu0 %454
  %456 = vrot.lane.b32.xlu0 %v253, 120
  %v457 = vpop.permute.xlu0 %456
  %458 = vrot.lane.b32.xlu0 %v259, 120
  %v459 = vpop.permute.xlu0 %458
  %460 = vrot.lane.b32.xlu0 %v265, 120
  %v461 = vpop.permute.xlu0 %460
  %462 = vrot.lane.b32.xlu0 %v241, 88
  %v463 = vpop.permute.xlu0 %462
  %464 = vrot.lane.b32.xlu0 %v247, 88
  %v465 = vpop.permute.xlu0 %464
  %466 = vrot.lane.b32.xlu0 %v253, 88
  %v467 = vpop.permute.xlu0 %466
  %468 = vrot.lane.b32.xlu0 %v259, 88
  %v469 = vpop.permute.xlu0 %468
  %470 = vrot.lane.b32.xlu0 %v265, 88
  %v471 = vpop.permute.xlu0 %470
  %v472 = vsel %vm284, %v453, 0
  %v474 = vsel %vm284, %v455, 0
  %v476 = vsel %vm284, %v457, 0
  %v478 = vsel %vm284, %v459, 0
  %v480 = vsel %vm284, %v461, 0
  %v482 = vsel %vm284, %v463, 0
  %v484 = vsel %vm284, %v465, 0
  %v486 = vsel %vm284, %v467, 0
  %v488 = vsel %vm284, %v469, 0
  %v490 = vsel %vm284, %v471, 0
  %492 = vmatprep.subr.mxu0 0.0
  %493 = vmatpush1.xpose.msra.mxu0 0.0
  %494 = vmatprep.subr.mxu0 0.0
  %495 = vmatpush1.xpose.msra.mxu0 0.0
  %496 = vmatprep.subr.mxu0 0.0
  %497 = vmatpush1.xpose.msra.mxu0 0.0
  %498 = vmatprep.subr.mxu0 0.0
  %499 = vmatpush1.xpose.msra.mxu0 0.0
  %500 = vmatprep.subr.mxu0 0.0
  %501 = vmatpush1.xpose.msra.mxu0 0.0
  %502 = vmatprep.subr.mxu0 0.0
  %503 = vmatpush1.xpose.msra.mxu0 0.0
  %504 = vmatprep.subr.mxu0 0.0
  %505 = vmatpush1.xpose.msra.mxu0 0.0
  %506 = vmatprep.subr.mxu0 0.0
  %507 = vmatpush1.xpose.msra.mxu0 0.0
  %508 = vmatprep.subr.mxu0 0.0
  %509 = vmatpush1.xpose.msra.mxu0 0.0
  %510 = vmatprep.subr.mxu0 0.0
  %511 = vmatpush1.xpose.msra.mxu0 0.0
  %512 = vmatprep.subr.mxu0 0.0
  %513 = vmatpush1.xpose.msra.mxu0 0.0
  %514 = vmatprep.subr.mxu0 0.0
  %515 = vmatpush1.xpose.msra.mxu0 %v490
  %516 = vmatprep.subr.mxu0 0.0
  %517 = vmatpush1.xpose.msra.mxu0 %v488
  %518 = vmatprep.subr.mxu0 0.0
  %519 = vmatpush1.xpose.msra.mxu0 %v486
  %520 = vmatprep.subr.mxu0 0.0
  %521 = vmatpush1.xpose.msra.mxu0 %v484
  %522 = vmatprep.subr.mxu0 0.0
  %523 = vmatpush1.xpose.msra.mxu0 %v482
  %524 = vmatprep.subr.mxu0 0.0
  %525 = vmatpush2.xpose.msra.mxu0 0.0
  %526 = vmatprep.subr.mxu0 0.0
  %527 = vmatpush2.xpose.msra.mxu0 0.0
  %528 = vmatprep.subr.mxu0 0.0
  %529 = vmatpush2.xpose.msra.mxu0 0.0
  %530 = vmatprep.subr.mxu0 0.0
  %531 = vmatpush2.xpose.msra.mxu0 0.0
  %532 = vmatprep.subr.mxu0 0.0
  %533 = vmatpush2.xpose.msra.mxu0 0.0
  %534 = vmatprep.subr.mxu0 0.0
  %535 = vmatpush2.xpose.msra.mxu0 0.0
  %536 = vmatprep.subr.mxu0 0.0
  %537 = vmatpush2.xpose.msra.mxu0 0.0
  %538 = vmatprep.subr.mxu0 0.0
  %539 = vmatpush2.xpose.msra.mxu0 0.0
  %540 = vmatprep.subr.mxu0 0.0
  %541 = vmatpush2.xpose.msra.mxu0 0.0
  %542 = vmatprep.subr.mxu0 0.0
  %543 = vmatpush2.xpose.msra.mxu0 0.0
  %544 = vmatprep.subr.mxu0 0.0
  %545 = vmatpush2.xpose.msra.mxu0 0.0
  %546 = vmatprep.subr.mxu0 0.0
  %547 = vmatpush2.xpose.msra.mxu0 0.0
  %548 = vmatprep.subr.mxu0 0.0
  %549 = vmatpush2.xpose.msra.mxu0 0.0
  %550 = vmatprep.subr.mxu0 0.0
  %551 = vmatpush2.xpose.msra.mxu0 0.0
  %552 = vmatprep.subr.mxu0 0.0
  %553 = vmatpush2.xpose.msra.mxu0 0.0
  %554 = vmatprep.subr.mxu0 0.0
  %555 = vmatpush2.xpose.msra.mxu0 0.0
  %556 = vmatprep.mubr.f32.mxu0 0.0
  %557 = vmatmul.mubr.f32.gmra.mxu0 %v472
  %v558 = vpop.f32.mrf.mxu0
  %v559 = vadd.f32 %v52, %v558
  %v560 = vpop.f32.mrf.mxu0
  %561 = vmatprep.mubr.f32.mxu0 0.0
  %562 = vmatmul.mubr.f32.gmra.mxu0 %v474
  %v563 = vpop.f32.mrf.mxu0
  %v564 = vadd.f32 %v53, %v563
  %v565 = vpop.f32.mrf.mxu0
  %566 = vmatprep.mubr.f32.mxu0 0.0
  %567 = vmatmul.mubr.f32.gmra.mxu0 %v476
  %v568 = vpop.f32.mrf.mxu0
  %v569 = vadd.f32 %v54, %v568
  %v570 = vpop.f32.mrf.mxu0
  %571 = vmatprep.mubr.f32.mxu0 0.0
  %572 = vmatmul.mubr.f32.gmra.mxu0 %v478
  %v573 = vpop.f32.mrf.mxu0
  %v574 = vadd.f32 %v55, %v573
  %v575 = vpop.f32.mrf.mxu0
  %576 = vmatprep.mubr.f32.mxu0 0.0
  %577 = vmatmul.mubr.f32.gmra.mxu0 %v480
  %v578 = vpop.f32.mrf.mxu0
  %v579 = vadd.f32 %v56, %v578
  %v580 = vpop.f32.mrf.mxu0
  %581 = vdwg.mxu0
  %v582 = vsel %vm395, %v559, -inf
  %583 = vmax.xlane.f32.xlu0 %v582
  %v584 = vpop.xlane.xlu0 %583
  %v585 = vsel %vm395, %v564, -inf
  %586 = vmax.xlane.f32.xlu0 %v585
  %v587 = vpop.xlane.xlu0 %586
  %v588 = vsel %vm395, %v569, -inf
  %589 = vmax.xlane.f32.xlu0 %v588
  %v590 = vpop.xlane.xlu0 %589
  %v591 = vsel %vm395, %v574, -inf
  %592 = vmax.xlane.f32.xlu0 %v591
  %v593 = vpop.xlane.xlu0 %592
  %v594 = vsel %vm408, %v579, -inf
  %595 = vmax.xlane.f32.xlu0 %v594
  %v596 = vpop.xlane.xlu0 %595
  %v597 = vsub.f32 %v559, %v584
  %v598 = vsub.f32 %v564, %v587
  %v599 = vsub.f32 %v569, %v590
  %v600 = vsub.f32 %v574, %v593
  %v601 = vsub.f32 %v579, %v596
  %v602 = vmul.f32 %v597, 1.442695
  %v603 = vpow.pop %v602
  %v604 = vmul.f32 %v598, 1.442695
  %v605 = vpow.pop %v604
  %v606 = vmul.f32 %v599, 1.442695
  %v607 = vpow.pop %v606
  %v608 = vmul.f32 %v600, 1.442695
  %v609 = vpow.pop %v608
  %v610 = vmul.f32 %v601, 1.442695
  %v611 = vpow.pop %v610
  %v612 = vsel %vm395, %v603, 0.0
  %613 = vadd.xlane.f32.xlu0 %v612
  %v614 = vpop.xlane.xlu0 %613
  %v615 = vsel %vm395, %v605, 0.0
  %616 = vadd.xlane.f32.xlu0 %v615
  %v617 = vpop.xlane.xlu0 %616
  %v618 = vsel %vm395, %v607, 0.0
  %619 = vadd.xlane.f32.xlu0 %v618
  %v620 = vpop.xlane.xlu0 %619
  %v621 = vsel %vm395, %v609, 0.0
  %622 = vadd.xlane.f32.xlu0 %v621
  %v623 = vpop.xlane.xlu0 %622
  %v624 = vsel %vm408, %v611, 0.0
  %625 = vadd.xlane.f32.xlu0 %v624
  %v626 = vpop.xlane.xlu0 %625
  %v627 = vrcp.pop %v614
  %v628 = vrcp.pop %v617
  %v629 = vrcp.pop %v620
  %v630 = vrcp.pop %v623
  %v631 = vrcp.pop %v626
  %v632 = vmul.f32 %v603, %v627
  %v633 = vmul.f32 %v605, %v628
  %v634 = vmul.f32 %v607, %v629
  %v635 = vmul.f32 %v609, %v630
  %v636 = vmul.f32 %v611, %v631
  %637 = vrot.lane.b32.xlu0 %v241, 32
  %v638 = vpop.permute.xlu0 %637
  %639 = vrot.lane.b32.xlu0 %v247, 32
  %v640 = vpop.permute.xlu0 %639
  %641 = vrot.lane.b32.xlu0 %v253, 32
  %v642 = vpop.permute.xlu0 %641
  %643 = vrot.lane.b32.xlu0 %v259, 32
  %v644 = vpop.permute.xlu0 %643
  %645 = vrot.lane.b32.xlu0 %v265, 32
  %v646 = vpop.permute.xlu0 %645
  %v652 = vsel %vm395, %v632, 0
  %v655 = vsel %vm395, %v633, 0
  %v658 = vsel %vm395, %v634, 0
  %v661 = vsel %vm395, %v635, 0
  %v664 = vsel %vm395, %v636, 0
  %vm666 = vcmask 1045504
  %v667 = vsel %vm666, %v646, 0
  %669 = vmatprep.subr.mxu0 0.0
  %670 = vmatpush1.msra.mxu0 0.0
  %671 = vmatprep.subr.mxu0 0.0
  %672 = vmatpush1.msra.mxu0 0.0
  %673 = vmatprep.subr.mxu0 0.0
  %674 = vmatpush1.msra.mxu0 0.0
  %675 = vmatprep.subr.mxu0 0.0
  %676 = vmatpush1.msra.mxu0 0.0
  %677 = vmatprep.subr.mxu0 0.0
  %678 = vmatpush1.msra.mxu0 0.0
  %679 = vmatprep.subr.mxu0 0.0
  %680 = vmatpush1.msra.mxu0 0.0
  %681 = vmatprep.subr.mxu0 0.0
  %682 = vmatpush1.msra.mxu0 0.0
  %683 = vmatprep.subr.mxu0 0.0
  %684 = vmatpush1.msra.mxu0 0.0
  %685 = vmatprep.subr.mxu0 0.0
  %686 = vmatpush1.msra.mxu0 0.0
  %687 = vmatprep.subr.mxu0 0.0
  %688 = vmatpush1.msra.mxu0 0.0
  %689 = vmatprep.subr.mxu0 0.0
  %690 = vmatpush1.msra.mxu0 0.0
  %691 = vmatprep.subr.mxu0 0.0
  %692 = vmatpush1.msra.mxu0 %v667
  %693 = vmatprep.subr.mxu0 0.0
  %694 = vmatpush1.msra.mxu0 %v644
  %695 = vmatprep.subr.mxu0 0.0
  %696 = vmatpush1.msra.mxu0 %v642
  %697 = vmatprep.subr.mxu0 0.0
  %698 = vmatpush1.msra.mxu0 %v640
  %699 = vmatprep.subr.mxu0 0.0
  %700 = vmatpush1.msra.mxu0 %v638
  %701 = vmatprep.subr.mxu0 0.0
  %702 = vmatpush2.msra.mxu0 0.0
  %703 = vmatprep.subr.mxu0 0.0
  %704 = vmatpush2.msra.mxu0 0.0
  %705 = vmatprep.subr.mxu0 0.0
  %706 = vmatpush2.msra.mxu0 0.0
  %707 = vmatprep.subr.mxu0 0.0
  %708 = vmatpush2.msra.mxu0 0.0
  %709 = vmatprep.subr.mxu0 0.0
  %710 = vmatpush2.msra.mxu0 0.0
  %711 = vmatprep.subr.mxu0 0.0
  %712 = vmatpush2.msra.mxu0 0.0
  %713 = vmatprep.subr.mxu0 0.0
  %714 = vmatpush2.msra.mxu0 0.0
  %715 = vmatprep.subr.mxu0 0.0
  %716 = vmatpush2.msra.mxu0 0.0
  %717 = vmatprep.subr.mxu0 0.0
  %718 = vmatpush2.msra.mxu0 0.0
  %719 = vmatprep.subr.mxu0 0.0
  %720 = vmatpush2.msra.mxu0 0.0
  %721 = vmatprep.subr.mxu0 0.0
  %722 = vmatpush2.msra.mxu0 0.0
  %723 = vmatprep.subr.mxu0 0.0
  %724 = vmatpush2.msra.mxu0 0.0
  %725 = vmatprep.subr.mxu0 0.0
  %726 = vmatpush2.msra.mxu0 0.0
  %727 = vmatprep.subr.mxu0 0.0
  %728 = vmatpush2.msra.mxu0 0.0
  %729 = vmatprep.subr.mxu0 0.0
  %730 = vmatpush2.msra.mxu0 0.0
  %731 = vmatprep.subr.mxu0 0.0
  %732 = vmatpush2.msra.mxu0 0.0
  %733 = vmatprep.mubr.f32.mxu0 0.0
  %734 = vmatmul.mubr.f32.gmra.mxu0 %v652
  %v735 = vpop.f32.mrf.mxu0
  %v736 = vadd.f32 0.0, %v735
  %v737 = vpop.f32.mrf.mxu0
  %738 = vmatprep.mubr.f32.mxu0 0.0
  %739 = vmatmul.mubr.f32.gmra.mxu0 %v655
  %v740 = vpop.f32.mrf.mxu0
  %v741 = vadd.f32 0.0, %v740
  %v742 = vpop.f32.mrf.mxu0
  %743 = vmatprep.mubr.f32.mxu0 0.0
  %744 = vmatmul.mubr.f32.gmra.mxu0 %v658
  %v745 = vpop.f32.mrf.mxu0
  %v746 = vadd.f32 0.0, %v745
  %v747 = vpop.f32.mrf.mxu0
  %748 = vmatprep.mubr.f32.mxu0 0.0
  %749 = vmatmul.mubr.f32.gmra.mxu0 %v661
  %v750 = vpop.f32.mrf.mxu0
  %v751 = vadd.f32 0.0, %v750
  %v752 = vpop.f32.mrf.mxu0
  %753 = vmatprep.mubr.f32.mxu0 0.0
  %754 = vmatmul.mubr.f32.gmra.mxu0 %v664
  %v755 = vpop.f32.mrf.mxu0
  %v756 = vadd.f32 0.0, %v755
  %v757 = vpop.f32.mrf.mxu0
  %758 = vdwg.mxu0
  %759 = vrot.lane.b32.xlu0 %v241, 64
  %v760 = vpop.permute.xlu0 %759
  %761 = vrot.lane.b32.xlu0 %v247, 64
  %v762 = vpop.permute.xlu0 %761
  %763 = vrot.lane.b32.xlu0 %v253, 64
  %v764 = vpop.permute.xlu0 %763
  %765 = vrot.lane.b32.xlu0 %v259, 64
  %v766 = vpop.permute.xlu0 %765
  %767 = vrot.lane.b32.xlu0 %v265, 64
  %v768 = vpop.permute.xlu0 %767
  %v774 = vsel %vm395, %v447, 0
  %v777 = vsel %vm395, %v448, 0
  %v780 = vsel %vm395, %v449, 0
  %v783 = vsel %vm395, %v450, 0
  %v786 = vsel %vm395, %v451, 0
  %v788 = vsel %vm666, %v768, 0
  %790 = vmatprep.subr.mxu0 0.0
  %791 = vmatpush1.msra.mxu0 0.0
  %792 = vmatprep.subr.mxu0 0.0
  %793 = vmatpush1.msra.mxu0 0.0
  %794 = vmatprep.subr.mxu0 0.0
  %795 = vmatpush1.msra.mxu0 0.0
  %796 = vmatprep.subr.mxu0 0.0
  %797 = vmatpush1.msra.mxu0 0.0
  %798 = vmatprep.subr.mxu0 0.0
  %799 = vmatpush1.msra.mxu0 0.0
  %800 = vmatprep.subr.mxu0 0.0
  %801 = vmatpush1.msra.mxu0 0.0
  %802 = vmatprep.subr.mxu0 0.0
  %803 = vmatpush1.msra.mxu0 0.0
  %804 = vmatprep.subr.mxu0 0.0
  %805 = vmatpush1.msra.mxu0 0.0
  %806 = vmatprep.subr.mxu0 0.0
  %807 = vmatpush1.msra.mxu0 0.0
  %808 = vmatprep.subr.mxu0 0.0
  %809 = vmatpush1.msra.mxu0 0.0
  %810 = vmatprep.subr.mxu0 0.0
  %811 = vmatpush1.msra.mxu0 0.0
  %812 = vmatprep.subr.mxu0 0.0
  %813 = vmatpush1.msra.mxu0 %v788
  %814 = vmatprep.subr.mxu0 0.0
  %815 = vmatpush1.msra.mxu0 %v766
  %816 = vmatprep.subr.mxu0 0.0
  %817 = vmatpush1.msra.mxu0 %v764
  %818 = vmatprep.subr.mxu0 0.0
  %819 = vmatpush1.msra.mxu0 %v762
  %820 = vmatprep.subr.mxu0 0.0
  %821 = vmatpush1.msra.mxu0 %v760
  %822 = vmatprep.subr.mxu0 0.0
  %823 = vmatpush2.msra.mxu0 0.0
  %824 = vmatprep.subr.mxu0 0.0
  %825 = vmatpush2.msra.mxu0 0.0
  %826 = vmatprep.subr.mxu0 0.0
  %827 = vmatpush2.msra.mxu0 0.0
  %828 = vmatprep.subr.mxu0 0.0
  %829 = vmatpush2.msra.mxu0 0.0
  %830 = vmatprep.subr.mxu0 0.0
  %831 = vmatpush2.msra.mxu0 0.0
  %832 = vmatprep.subr.mxu0 0.0
  %833 = vmatpush2.msra.mxu0 0.0
  %834 = vmatprep.subr.mxu0 0.0
  %835 = vmatpush2.msra.mxu0 0.0
  %836 = vmatprep.subr.mxu0 0.0
  %837 = vmatpush2.msra.mxu0 0.0
  %838 = vmatprep.subr.mxu0 0.0
  %839 = vmatpush2.msra.mxu0 0.0
  %840 = vmatprep.subr.mxu0 0.0
  %841 = vmatpush2.msra.mxu0 0.0
  %842 = vmatprep.subr.mxu0 0.0
  %843 = vmatpush2.msra.mxu0 0.0
  %844 = vmatprep.subr.mxu0 0.0
  %845 = vmatpush2.msra.mxu0 0.0
  %846 = vmatprep.subr.mxu0 0.0
  %847 = vmatpush2.msra.mxu0 0.0
  %848 = vmatprep.subr.mxu0 0.0
  %849 = vmatpush2.msra.mxu0 0.0
  %850 = vmatprep.subr.mxu0 0.0
  %851 = vmatpush2.msra.mxu0 0.0
  %852 = vmatprep.subr.mxu0 0.0
  %853 = vmatpush2.msra.mxu0 0.0
  %854 = vmatprep.mubr.f32.mxu0 0.0
  %855 = vmatmul.mubr.f32.gmra.mxu0 %v774
  %v856 = vpop.f32.mrf.mxu0
  %v857 = vadd.f32 %v736, %v856
  %v858 = vpop.f32.mrf.mxu0
  %859 = vmatprep.mubr.f32.mxu0 0.0
  %860 = vmatmul.mubr.f32.gmra.mxu0 %v777
  %v861 = vpop.f32.mrf.mxu0
  %v862 = vadd.f32 %v741, %v861
  %v863 = vpop.f32.mrf.mxu0
  %864 = vmatprep.mubr.f32.mxu0 0.0
  %865 = vmatmul.mubr.f32.gmra.mxu0 %v780
  %v866 = vpop.f32.mrf.mxu0
  %v867 = vadd.f32 %v746, %v866
  %v868 = vpop.f32.mrf.mxu0
  %869 = vmatprep.mubr.f32.mxu0 0.0
  %870 = vmatmul.mubr.f32.gmra.mxu0 %v783
  %v871 = vpop.f32.mrf.mxu0
  %v872 = vadd.f32 %v751, %v871
  %v873 = vpop.f32.mrf.mxu0
  %874 = vmatprep.mubr.f32.mxu0 0.0
  %875 = vmatmul.mubr.f32.gmra.mxu0 %v786
  %v876 = vpop.f32.mrf.mxu0
  %v877 = vadd.f32 %v756, %v876
  %v878 = vpop.f32.mrf.mxu0
  %879 = vdwg.mxu0
  %880 = vrot.lane.b32.xlu0 %v241, 112
  %v881 = vpop.permute.xlu0 %880
  %882 = vrot.lane.b32.xlu0 %v247, 112
  %v883 = vpop.permute.xlu0 %882
  %884 = vrot.lane.b32.xlu0 %v253, 112
  %v885 = vpop.permute.xlu0 %884
  %886 = vrot.lane.b32.xlu0 %v259, 112
  %v887 = vpop.permute.xlu0 %886
  %888 = vrot.lane.b32.xlu0 %v265, 112
  %v889 = vpop.permute.xlu0 %888
  %890 = vrot.lane.b32.xlu0 %v241, 80
  %v891 = vpop.permute.xlu0 %890
  %892 = vrot.lane.b32.xlu0 %v247, 80
  %v893 = vpop.permute.xlu0 %892
  %894 = vrot.lane.b32.xlu0 %v253, 80
  %v895 = vpop.permute.xlu0 %894
  %896 = vrot.lane.b32.xlu0 %v259, 80
  %v897 = vpop.permute.xlu0 %896
  %898 = vrot.lane.b32.xlu0 %v265, 80
  %v899 = vpop.permute.xlu0 %898
  %v900 = vsel %vm284, %v881, 0
  %v902 = vsel %vm284, %v883, 0
  %v904 = vsel %vm284, %v885, 0
  %v906 = vsel %vm284, %v887, 0
  %v908 = vsel %vm284, %v889, 0
  %v910 = vsel %vm284, %v891, 0
  %v912 = vsel %vm284, %v893, 0
  %v914 = vsel %vm284, %v895, 0
  %v916 = vsel %vm284, %v897, 0
  %v918 = vsel %vm284, %v899, 0
  %920 = vmatprep.subr.mxu0 0.0
  %921 = vmatpush1.xpose.msra.mxu0 0.0
  %922 = vmatprep.subr.mxu0 0.0
  %923 = vmatpush1.xpose.msra.mxu0 0.0
  %924 = vmatprep.subr.mxu0 0.0
  %925 = vmatpush1.xpose.msra.mxu0 0.0
  %926 = vmatprep.subr.mxu0 0.0
  %927 = vmatpush1.xpose.msra.mxu0 0.0
  %928 = vmatprep.subr.mxu0 0.0
  %929 = vmatpush1.xpose.msra.mxu0 0.0
  %930 = vmatprep.subr.mxu0 0.0
  %931 = vmatpush1.xpose.msra.mxu0 0.0
  %932 = vmatprep.subr.mxu0 0.0
  %933 = vmatpush1.xpose.msra.mxu0 0.0
  %934 = vmatprep.subr.mxu0 0.0
  %935 = vmatpush1.xpose.msra.mxu0 0.0
  %936 = vmatprep.subr.mxu0 0.0
  %937 = vmatpush1.xpose.msra.mxu0 0.0
  %938 = vmatprep.subr.mxu0 0.0
  %939 = vmatpush1.xpose.msra.mxu0 0.0
  %940 = vmatprep.subr.mxu0 0.0
  %941 = vmatpush1.xpose.msra.mxu0 0.0
  %942 = vmatprep.subr.mxu0 0.0
  %943 = vmatpush1.xpose.msra.mxu0 %v918
  %944 = vmatprep.subr.mxu0 0.0
  %945 = vmatpush1.xpose.msra.mxu0 %v916
  %946 = vmatprep.subr.mxu0 0.0
  %947 = vmatpush1.xpose.msra.mxu0 %v914
  %948 = vmatprep.subr.mxu0 0.0
  %949 = vmatpush1.xpose.msra.mxu0 %v912
  %950 = vmatprep.subr.mxu0 0.0
  %951 = vmatpush1.xpose.msra.mxu0 %v910
  %952 = vmatprep.subr.mxu0 0.0
  %953 = vmatpush2.xpose.msra.mxu0 0.0
  %954 = vmatprep.subr.mxu0 0.0
  %955 = vmatpush2.xpose.msra.mxu0 0.0
  %956 = vmatprep.subr.mxu0 0.0
  %957 = vmatpush2.xpose.msra.mxu0 0.0
  %958 = vmatprep.subr.mxu0 0.0
  %959 = vmatpush2.xpose.msra.mxu0 0.0
  %960 = vmatprep.subr.mxu0 0.0
  %961 = vmatpush2.xpose.msra.mxu0 0.0
  %962 = vmatprep.subr.mxu0 0.0
  %963 = vmatpush2.xpose.msra.mxu0 0.0
  %964 = vmatprep.subr.mxu0 0.0
  %965 = vmatpush2.xpose.msra.mxu0 0.0
  %966 = vmatprep.subr.mxu0 0.0
  %967 = vmatpush2.xpose.msra.mxu0 0.0
  %968 = vmatprep.subr.mxu0 0.0
  %969 = vmatpush2.xpose.msra.mxu0 0.0
  %970 = vmatprep.subr.mxu0 0.0
  %971 = vmatpush2.xpose.msra.mxu0 0.0
  %972 = vmatprep.subr.mxu0 0.0
  %973 = vmatpush2.xpose.msra.mxu0 0.0
  %974 = vmatprep.subr.mxu0 0.0
  %975 = vmatpush2.xpose.msra.mxu0 0.0
  %976 = vmatprep.subr.mxu0 0.0
  %977 = vmatpush2.xpose.msra.mxu0 0.0
  %978 = vmatprep.subr.mxu0 0.0
  %979 = vmatpush2.xpose.msra.mxu0 0.0
  %980 = vmatprep.subr.mxu0 0.0
  %981 = vmatpush2.xpose.msra.mxu0 0.0
  %982 = vmatprep.subr.mxu0 0.0
  %983 = vmatpush2.xpose.msra.mxu0 0.0
  %984 = vmatprep.mubr.f32.mxu0 0.0
  %985 = vmatmul.mubr.f32.gmra.mxu0 %v900
  %v986 = vpop.f32.mrf.mxu0
  %v987 = vadd.f32 %v57, %v986
  %v988 = vpop.f32.mrf.mxu0
  %989 = vmatprep.mubr.f32.mxu0 0.0
  %990 = vmatmul.mubr.f32.gmra.mxu0 %v902
  %v991 = vpop.f32.mrf.mxu0
  %v992 = vadd.f32 %v58, %v991
  %v993 = vpop.f32.mrf.mxu0
  %994 = vmatprep.mubr.f32.mxu0 0.0
  %995 = vmatmul.mubr.f32.gmra.mxu0 %v904
  %v996 = vpop.f32.mrf.mxu0
  %v997 = vadd.f32 %v59, %v996
  %v998 = vpop.f32.mrf.mxu0
  %999 = vmatprep.mubr.f32.mxu0 0.0
  %1000 = vmatmul.mubr.f32.gmra.mxu0 %v906
  %v1001 = vpop.f32.mrf.mxu0
  %v1002 = vadd.f32 %v60, %v1001
  %v1003 = vpop.f32.mrf.mxu0
  %1004 = vmatprep.mubr.f32.mxu0 0.0
  %1005 = vmatmul.mubr.f32.gmra.mxu0 %v908
  %v1006 = vpop.f32.mrf.mxu0
  %v1007 = vadd.f32 %v61, %v1006
  %v1008 = vpop.f32.mrf.mxu0
  %1009 = vdwg.mxu0
  %v1010 = vsel %vm395, %v987, -inf
  %1011 = vmax.xlane.f32.xlu0 %v1010
  %v1012 = vpop.xlane.xlu0 %1011
  %v1013 = vsel %vm395, %v992, -inf
  %1014 = vmax.xlane.f32.xlu0 %v1013
  %v1015 = vpop.xlane.xlu0 %1014
  %v1016 = vsel %vm395, %v997, -inf
  %1017 = vmax.xlane.f32.xlu0 %v1016
  %v1018 = vpop.xlane.xlu0 %1017
  %v1019 = vsel %vm395, %v1002, -inf
  %1020 = vmax.xlane.f32.xlu0 %v1019
  %v1021 = vpop.xlane.xlu0 %1020
  %v1022 = vsel %vm408, %v1007, -inf
  %1023 = vmax.xlane.f32.xlu0 %v1022
  %v1024 = vpop.xlane.xlu0 %1023
  %v1025 = vsub.f32 %v987, %v1012
  %v1026 = vsub.f32 %v992, %v1015
  %v1027 = vsub.f32 %v997, %v1018
  %v1028 = vsub.f32 %v1002, %v1021
  %v1029 = vsub.f32 %v1007, %v1024
  %v1030 = vmul.f32 %v1025, 1.442695
  %v1031 = vpow.pop %v1030
  %v1032 = vmul.f32 %v1026, 1.442695
  %v1033 = vpow.pop %v1032
  %v1034 = vmul.f32 %v1027, 1.442695
  %v1035 = vpow.pop %v1034
  %v1036 = vmul.f32 %v1028, 1.442695
  %v1037 = vpow.pop %v1036
  %v1038 = vmul.f32 %v1029, 1.442695
  %v1039 = vpow.pop %v1038
  %v1040 = vsel %vm395, %v1031, 0.0
  %1041 = vadd.xlane.f32.xlu0 %v1040
  %v1042 = vpop.xlane.xlu0 %1041
  %v1043 = vsel %vm395, %v1033, 0.0
  %1044 = vadd.xlane.f32.xlu0 %v1043
  %v1045 = vpop.xlane.xlu0 %1044
  %v1046 = vsel %vm395, %v1035, 0.0
  %1047 = vadd.xlane.f32.xlu0 %v1046
  %v1048 = vpop.xlane.xlu0 %1047
  %v1049 = vsel %vm395, %v1037, 0.0
  %1050 = vadd.xlane.f32.xlu0 %v1049
  %v1051 = vpop.xlane.xlu0 %1050
  %v1052 = vsel %vm408, %v1039, 0.0
  %1053 = vadd.xlane.f32.xlu0 %v1052
  %v1054 = vpop.xlane.xlu0 %1053
  %v1055 = vrcp.pop %v1042
  %v1056 = vrcp.pop %v1045
  %v1057 = vrcp.pop %v1048
  %v1058 = vrcp.pop %v1051
  %v1059 = vrcp.pop %v1054
  %v1060 = vmul.f32 %v1031, %v1055
  %v1061 = vmul.f32 %v1033, %v1056
  %v1062 = vmul.f32 %v1035, %v1057
  %v1063 = vmul.f32 %v1037, %v1058
  %v1064 = vmul.f32 %v1039, %v1059
  %v1066 = vsel %vm395, %v1060, 0
  %v1069 = vsel %vm395, %v1061, 0
  %v1072 = vsel %vm395, %v1062, 0
  %v1075 = vsel %vm395, %v1063, 0
  %v1078 = vsel %vm395, %v1064, 0
  %v1081 = vsel %vm666, %v267, 0
  %1083 = vmatprep.subr.mxu0 0.0
  %1084 = vmatpush1.msra.mxu0 0.0
  %1085 = vmatprep.subr.mxu0 0.0
  %1086 = vmatpush1.msra.mxu0 0.0
  %1087 = vmatprep.subr.mxu0 0.0
  %1088 = vmatpush1.msra.mxu0 0.0
  %1089 = vmatprep.subr.mxu0 0.0
  %1090 = vmatpush1.msra.mxu0 0.0
  %1091 = vmatprep.subr.mxu0 0.0
  %1092 = vmatpush1.msra.mxu0 0.0
  %1093 = vmatprep.subr.mxu0 0.0
  %1094 = vmatpush1.msra.mxu0 0.0
  %1095 = vmatprep.subr.mxu0 0.0
  %1096 = vmatpush1.msra.mxu0 0.0
  %1097 = vmatprep.subr.mxu0 0.0
  %1098 = vmatpush1.msra.mxu0 0.0
  %1099 = vmatprep.subr.mxu0 0.0
  %1100 = vmatpush1.msra.mxu0 0.0
  %1101 = vmatprep.subr.mxu0 0.0
  %1102 = vmatpush1.msra.mxu0 0.0
  %1103 = vmatprep.subr.mxu0 0.0
  %1104 = vmatpush1.msra.mxu0 0.0
  %1105 = vmatprep.subr.mxu0 0.0
  %1106 = vmatpush1.msra.mxu0 %v1081
  %1107 = vmatprep.subr.mxu0 0.0
  %1108 = vmatpush1.msra.mxu0 %v261
  %1109 = vmatprep.subr.mxu0 0.0
  %1110 = vmatpush1.msra.mxu0 %v255
  %1111 = vmatprep.subr.mxu0 0.0
  %1112 = vmatpush1.msra.mxu0 %v249
  %1113 = vmatprep.subr.mxu0 0.0
  %1114 = vmatpush1.msra.mxu0 %v243
  %1115 = vmatprep.subr.mxu0 0.0
  %1116 = vmatpush2.msra.mxu0 0.0
  %1117 = vmatprep.subr.mxu0 0.0
  %1118 = vmatpush2.msra.mxu0 0.0
  %1119 = vmatprep.subr.mxu0 0.0
  %1120 = vmatpush2.msra.mxu0 0.0
  %1121 = vmatprep.subr.mxu0 0.0
  %1122 = vmatpush2.msra.mxu0 0.0
  %1123 = vmatprep.subr.mxu0 0.0
  %1124 = vmatpush2.msra.mxu0 0.0
  %1125 = vmatprep.subr.mxu0 0.0
  %1126 = vmatpush2.msra.mxu0 0.0
  %1127 = vmatprep.subr.mxu0 0.0
  %1128 = vmatpush2.msra.mxu0 0.0
  %1129 = vmatprep.subr.mxu0 0.0
  %1130 = vmatpush2.msra.mxu0 0.0
  %1131 = vmatprep.subr.mxu0 0.0
  %1132 = vmatpush2.msra.mxu0 0.0
  %1133 = vmatprep.subr.mxu0 0.0
  %1134 = vmatpush2.msra.mxu0 0.0
  %1135 = vmatprep.subr.mxu0 0.0
  %1136 = vmatpush2.msra.mxu0 0.0
  %1137 = vmatprep.subr.mxu0 0.0
  %1138 = vmatpush2.msra.mxu0 0.0
  %1139 = vmatprep.subr.mxu0 0.0
  %1140 = vmatpush2.msra.mxu0 0.0
  %1141 = vmatprep.subr.mxu0 0.0
  %1142 = vmatpush2.msra.mxu0 0.0
  %1143 = vmatprep.subr.mxu0 0.0
  %1144 = vmatpush2.msra.mxu0 0.0
  %1145 = vmatprep.subr.mxu0 0.0
  %1146 = vmatpush2.msra.mxu0 0.0
  %1147 = vmatprep.mubr.f32.mxu0 0.0
  %1148 = vmatmul.mubr.f32.gmra.mxu0 %v1066
  %v1149 = vpop.f32.mrf.mxu0
  %v1150 = vadd.f32 0.0, %v1149
  %v1151 = vpop.f32.mrf.mxu0
  %1152 = vmatprep.mubr.f32.mxu0 0.0
  %1153 = vmatmul.mubr.f32.gmra.mxu0 %v1069
  %v1154 = vpop.f32.mrf.mxu0
  %v1155 = vadd.f32 0.0, %v1154
  %v1156 = vpop.f32.mrf.mxu0
  %1157 = vmatprep.mubr.f32.mxu0 0.0
  %1158 = vmatmul.mubr.f32.gmra.mxu0 %v1072
  %v1159 = vpop.f32.mrf.mxu0
  %v1160 = vadd.f32 0.0, %v1159
  %v1161 = vpop.f32.mrf.mxu0
  %1162 = vmatprep.mubr.f32.mxu0 0.0
  %1163 = vmatmul.mubr.f32.gmra.mxu0 %v1075
  %v1164 = vpop.f32.mrf.mxu0
  %v1165 = vadd.f32 0.0, %v1164
  %v1166 = vpop.f32.mrf.mxu0
  %1167 = vmatprep.mubr.f32.mxu0 0.0
  %1168 = vmatmul.mubr.f32.gmra.mxu0 %v1078
  %v1169 = vpop.f32.mrf.mxu0
  %v1170 = vadd.f32 0.0, %v1169
  %v1171 = vpop.f32.mrf.mxu0
  %1172 = vdwg.mxu0
  %v1173 = vadd.f32 %v857, %v1150
  %v1174 = vadd.f32 %v862, %v1155
  %v1175 = vadd.f32 %v867, %v1160
  %v1176 = vadd.f32 %v872, %v1165
  %v1177 = vadd.f32 %v877, %v1170
  %1178 = vrot.lane.b32.xlu0 %v241, 104
  %v1179 = vpop.permute.xlu0 %1178
  %1180 = vrot.lane.b32.xlu0 %v247, 104
  %v1181 = vpop.permute.xlu0 %1180
  %1182 = vrot.lane.b32.xlu0 %v253, 104
  %v1183 = vpop.permute.xlu0 %1182
  %1184 = vrot.lane.b32.xlu0 %v259, 104
  %v1185 = vpop.permute.xlu0 %1184
  %1186 = vrot.lane.b32.xlu0 %v265, 104
  %v1187 = vpop.permute.xlu0 %1186
  %1188 = vrot.lane.b32.xlu0 %v241, 72
  %v1189 = vpop.permute.xlu0 %1188
  %1190 = vrot.lane.b32.xlu0 %v247, 72
  %v1191 = vpop.permute.xlu0 %1190
  %1192 = vrot.lane.b32.xlu0 %v253, 72
  %v1193 = vpop.permute.xlu0 %1192
  %1194 = vrot.lane.b32.xlu0 %v259, 72
  %v1195 = vpop.permute.xlu0 %1194
  %1196 = vrot.lane.b32.xlu0 %v265, 72
  %v1197 = vpop.permute.xlu0 %1196
  %v1198 = vsel %vm284, %v1179, 0
  %v1200 = vsel %vm284, %v1181, 0
  %v1202 = vsel %vm284, %v1183, 0
  %v1204 = vsel %vm284, %v1185, 0
  %v1206 = vsel %vm284, %v1187, 0
  %v1208 = vsel %vm284, %v1189, 0
  %v1210 = vsel %vm284, %v1191, 0
  %v1212 = vsel %vm284, %v1193, 0
  %v1214 = vsel %vm284, %v1195, 0
  %v1216 = vsel %vm284, %v1197, 0
  %1218 = vmatprep.subr.mxu0 0.0
  %1219 = vmatpush1.xpose.msra.mxu0 0.0
  %1220 = vmatprep.subr.mxu0 0.0
  %1221 = vmatpush1.xpose.msra.mxu0 0.0
  %1222 = vmatprep.subr.mxu0 0.0
  %1223 = vmatpush1.xpose.msra.mxu0 0.0
  %1224 = vmatprep.subr.mxu0 0.0
  %1225 = vmatpush1.xpose.msra.mxu0 0.0
  %1226 = vmatprep.subr.mxu0 0.0
  %1227 = vmatpush1.xpose.msra.mxu0 0.0
  %1228 = vmatprep.subr.mxu0 0.0
  %1229 = vmatpush1.xpose.msra.mxu0 0.0
  %1230 = vmatprep.subr.mxu0 0.0
  %1231 = vmatpush1.xpose.msra.mxu0 0.0
  %1232 = vmatprep.subr.mxu0 0.0
  %1233 = vmatpush1.xpose.msra.mxu0 0.0
  %1234 = vmatprep.subr.mxu0 0.0
  %1235 = vmatpush1.xpose.msra.mxu0 0.0
  %1236 = vmatprep.subr.mxu0 0.0
  %1237 = vmatpush1.xpose.msra.mxu0 0.0
  %1238 = vmatprep.subr.mxu0 0.0
  %1239 = vmatpush1.xpose.msra.mxu0 0.0
  %1240 = vmatprep.subr.mxu0 0.0
  %1241 = vmatpush1.xpose.msra.mxu0 %v1216
  %1242 = vmatprep.subr.mxu0 0.0
  %1243 = vmatpush1.xpose.msra.mxu0 %v1214
  %1244 = vmatprep.subr.mxu0 0.0
  %1245 = vmatpush1.xpose.msra.mxu0 %v1212
  %1246 = vmatprep.subr.mxu0 0.0
  %1247 = vmatpush1.xpose.msra.mxu0 %v1210
  %1248 = vmatprep.subr.mxu0 0.0
  %1249 = vmatpush1.xpose.msra.mxu0 %v1208
  %1250 = vmatprep.subr.mxu0 0.0
  %1251 = vmatpush2.xpose.msra.mxu0 0.0
  %1252 = vmatprep.subr.mxu0 0.0
  %1253 = vmatpush2.xpose.msra.mxu0 0.0
  %1254 = vmatprep.subr.mxu0 0.0
  %1255 = vmatpush2.xpose.msra.mxu0 0.0
  %1256 = vmatprep.subr.mxu0 0.0
  %1257 = vmatpush2.xpose.msra.mxu0 0.0
  %1258 = vmatprep.subr.mxu0 0.0
  %1259 = vmatpush2.xpose.msra.mxu0 0.0
  %1260 = vmatprep.subr.mxu0 0.0
  %1261 = vmatpush2.xpose.msra.mxu0 0.0
  %1262 = vmatprep.subr.mxu0 0.0
  %1263 = vmatpush2.xpose.msra.mxu0 0.0
  %1264 = vmatprep.subr.mxu0 0.0
  %1265 = vmatpush2.xpose.msra.mxu0 0.0
  %1266 = vmatprep.subr.mxu0 0.0
  %1267 = vmatpush2.xpose.msra.mxu0 0.0
  %1268 = vmatprep.subr.mxu0 0.0
  %1269 = vmatpush2.xpose.msra.mxu0 0.0
  %1270 = vmatprep.subr.mxu0 0.0
  %1271 = vmatpush2.xpose.msra.mxu0 0.0
  %1272 = vmatprep.subr.mxu0 0.0
  %1273 = vmatpush2.xpose.msra.mxu0 0.0
  %1274 = vmatprep.subr.mxu0 0.0
  %1275 = vmatpush2.xpose.msra.mxu0 0.0
  %1276 = vmatprep.subr.mxu0 0.0
  %1277 = vmatpush2.xpose.msra.mxu0 0.0
  %1278 = vmatprep.subr.mxu0 0.0
  %1279 = vmatpush2.xpose.msra.mxu0 0.0
  %1280 = vmatprep.subr.mxu0 0.0
  %1281 = vmatpush2.xpose.msra.mxu0 0.0
  %1282 = vmatprep.mubr.f32.mxu0 0.0
  %1283 = vmatmul.mubr.f32.gmra.mxu0 %v1198
  %v1284 = vpop.f32.mrf.mxu0
  %v1285 = vadd.f32 %v62, %v1284
  %v1286 = vpop.f32.mrf.mxu0
  %1287 = vmatprep.mubr.f32.mxu0 0.0
  %1288 = vmatmul.mubr.f32.gmra.mxu0 %v1200
  %v1289 = vpop.f32.mrf.mxu0
  %v1290 = vadd.f32 %v63, %v1289
  %v1291 = vpop.f32.mrf.mxu0
  %1292 = vmatprep.mubr.f32.mxu0 0.0
  %1293 = vmatmul.mubr.f32.gmra.mxu0 %v1202
  %v1294 = vpop.f32.mrf.mxu0
  %v1295 = vadd.f32 %v64, %v1294
  %v1296 = vpop.f32.mrf.mxu0
  %1297 = vmatprep.mubr.f32.mxu0 0.0
  %1298 = vmatmul.mubr.f32.gmra.mxu0 %v1204
  %v1299 = vpop.f32.mrf.mxu0
  %v1300 = vadd.f32 %v65, %v1299
  %v1301 = vpop.f32.mrf.mxu0
  %1302 = vmatprep.mubr.f32.mxu0 0.0
  %1303 = vmatmul.mubr.f32.gmra.mxu0 %v1206
  %v1304 = vpop.f32.mrf.mxu0
  %v1305 = vadd.f32 %v66, %v1304
  %v1306 = vpop.f32.mrf.mxu0
  %1307 = vdwg.mxu0
  %v1308 = vsel %vm395, %v1285, -inf
  %1309 = vmax.xlane.f32.xlu0 %v1308
  %v1310 = vpop.xlane.xlu0 %1309
  %v1311 = vsel %vm395, %v1290, -inf
  %1312 = vmax.xlane.f32.xlu0 %v1311
  %v1313 = vpop.xlane.xlu0 %1312
  %v1314 = vsel %vm395, %v1295, -inf
  %1315 = vmax.xlane.f32.xlu0 %v1314
  %v1316 = vpop.xlane.xlu0 %1315
  %v1317 = vsel %vm395, %v1300, -inf
  %1318 = vmax.xlane.f32.xlu0 %v1317
  %v1319 = vpop.xlane.xlu0 %1318
  %v1320 = vsel %vm408, %v1305, -inf
  %1321 = vmax.xlane.f32.xlu0 %v1320
  %v1322 = vpop.xlane.xlu0 %1321
  %v1323 = vsub.f32 %v1285, %v1310
  %v1324 = vsub.f32 %v1290, %v1313
  %v1325 = vsub.f32 %v1295, %v1316
  %v1326 = vsub.f32 %v1300, %v1319
  %v1327 = vsub.f32 %v1305, %v1322
  %v1328 = vmul.f32 %v1323, 1.442695
  %v1329 = vpow.pop %v1328
  %v1330 = vmul.f32 %v1324, 1.442695
  %v1331 = vpow.pop %v1330
  %v1332 = vmul.f32 %v1325, 1.442695
  %v1333 = vpow.pop %v1332
  %v1334 = vmul.f32 %v1326, 1.442695
  %v1335 = vpow.pop %v1334
  %v1336 = vmul.f32 %v1327, 1.442695
  %v1337 = vpow.pop %v1336
  %v1338 = vsel %vm395, %v1329, 0.0
  %1339 = vadd.xlane.f32.xlu0 %v1338
  %v1340 = vpop.xlane.xlu0 %1339
  %v1341 = vsel %vm395, %v1331, 0.0
  %1342 = vadd.xlane.f32.xlu0 %v1341
  %v1343 = vpop.xlane.xlu0 %1342
  %v1344 = vsel %vm395, %v1333, 0.0
  %1345 = vadd.xlane.f32.xlu0 %v1344
  %v1346 = vpop.xlane.xlu0 %1345
  %v1347 = vsel %vm395, %v1335, 0.0
  %1348 = vadd.xlane.f32.xlu0 %v1347
  %v1349 = vpop.xlane.xlu0 %1348
  %v1350 = vsel %vm408, %v1337, 0.0
  %1351 = vadd.xlane.f32.xlu0 %v1350
  %v1352 = vpop.xlane.xlu0 %1351
  %v1353 = vrcp.pop %v1340
  %v1354 = vrcp.pop %v1343
  %v1355 = vrcp.pop %v1346
  %v1356 = vrcp.pop %v1349
  %v1357 = vrcp.pop %v1352
  %v1358 = vmul.f32 %v1329, %v1353
  %v1359 = vmul.f32 %v1331, %v1354
  %v1360 = vmul.f32 %v1333, %v1355
  %v1361 = vmul.f32 %v1335, %v1356
  %v1362 = vmul.f32 %v1337, %v1357
  %1367 = vrot.lane.b32.xlu0 %v243, 96
  %v1368 = vpop.permute.xlu0 %1367
  %1369 = vrot.lane.b32.xlu0 %v249, 96
  %v1370 = vpop.permute.xlu0 %1369
  %1371 = vrot.lane.b32.xlu0 %v255, 96
  %v1372 = vpop.permute.xlu0 %1371
  %1373 = vrot.lane.b32.xlu0 %v261, 96
  %v1374 = vpop.permute.xlu0 %1373
  %1375 = vrot.lane.b32.xlu0 %v267, 96
  %v1376 = vpop.permute.xlu0 %1375
  %v1382 = vsel %vm395, %v1358, 0
  %v1385 = vsel %vm395, %v1359, 0
  %v1388 = vsel %vm395, %v1360, 0
  %v1391 = vsel %vm395, %v1361, 0
  %v1394 = vsel %vm395, %v1362, 0
  %v1396 = vsel %vm666, %v1376, 0
  %1398 = vmatprep.subr.mxu0 0.0
  %1399 = vmatpush1.msra.mxu0 0.0
  %1400 = vmatprep.subr.mxu0 0.0
  %1401 = vmatpush1.msra.mxu0 0.0
  %1402 = vmatprep.subr.mxu0 0.0
  %1403 = vmatpush1.msra.mxu0 0.0
  %1404 = vmatprep.subr.mxu0 0.0
  %1405 = vmatpush1.msra.mxu0 0.0
  %1406 = vmatprep.subr.mxu0 0.0
  %1407 = vmatpush1.msra.mxu0 0.0
  %1408 = vmatprep.subr.mxu0 0.0
  %1409 = vmatpush1.msra.mxu0 0.0
  %1410 = vmatprep.subr.mxu0 0.0
  %1411 = vmatpush1.msra.mxu0 0.0
  %1412 = vmatprep.subr.mxu0 0.0
  %1413 = vmatpush1.msra.mxu0 0.0
  %1414 = vmatprep.subr.mxu0 0.0
  %1415 = vmatpush1.msra.mxu0 0.0
  %1416 = vmatprep.subr.mxu0 0.0
  %1417 = vmatpush1.msra.mxu0 0.0
  %1418 = vmatprep.subr.mxu0 0.0
  %1419 = vmatpush1.msra.mxu0 0.0
  %1420 = vmatprep.subr.mxu0 0.0
  %1421 = vmatpush1.msra.mxu0 %v1396
  %1422 = vmatprep.subr.mxu0 0.0
  %1423 = vmatpush1.msra.mxu0 %v1374
  %1424 = vmatprep.subr.mxu0 0.0
  %1425 = vmatpush1.msra.mxu0 %v1372
  %1426 = vmatprep.subr.mxu0 0.0
  %1427 = vmatpush1.msra.mxu0 %v1370
  %1428 = vmatprep.subr.mxu0 0.0
  %1429 = vmatpush1.msra.mxu0 %v1368
  %1430 = vmatprep.subr.mxu0 0.0
  %1431 = vmatpush2.msra.mxu0 0.0
  %1432 = vmatprep.subr.mxu0 0.0
  %1433 = vmatpush2.msra.mxu0 0.0
  %1434 = vmatprep.subr.mxu0 0.0
  %1435 = vmatpush2.msra.mxu0 0.0
  %1436 = vmatprep.subr.mxu0 0.0
  %1437 = vmatpush2.msra.mxu0 0.0
  %1438 = vmatprep.subr.mxu0 0.0
  %1439 = vmatpush2.msra.mxu0 0.0
  %1440 = vmatprep.subr.mxu0 0.0
  %1441 = vmatpush2.msra.mxu0 0.0
  %1442 = vmatprep.subr.mxu0 0.0
  %1443 = vmatpush2.msra.mxu0 0.0
  %1444 = vmatprep.subr.mxu0 0.0
  %1445 = vmatpush2.msra.mxu0 0.0
  %1446 = vmatprep.subr.mxu0 0.0
  %1447 = vmatpush2.msra.mxu0 0.0
  %1448 = vmatprep.subr.mxu0 0.0
  %1449 = vmatpush2.msra.mxu0 0.0
  %1450 = vmatprep.subr.mxu0 0.0
  %1451 = vmatpush2.msra.mxu0 0.0
  %1452 = vmatprep.subr.mxu0 0.0
  %1453 = vmatpush2.msra.mxu0 0.0
  %1454 = vmatprep.subr.mxu0 0.0
  %1455 = vmatpush2.msra.mxu0 0.0
  %1456 = vmatprep.subr.mxu0 0.0
  %1457 = vmatpush2.msra.mxu0 0.0
  %1458 = vmatprep.subr.mxu0 0.0
  %1459 = vmatpush2.msra.mxu0 0.0
  %1460 = vmatprep.subr.mxu0 0.0
  %1461 = vmatpush2.msra.mxu0 0.0
  %1462 = vmatprep.mubr.f32.mxu0 0.0
  %1463 = vmatmul.mubr.f32.gmra.mxu0 %v1382
  %v1464 = vpop.f32.mrf.mxu0
  %v1465 = vadd.f32 0.0, %v1464
  %v1466 = vpop.f32.mrf.mxu0
  %1467 = vmatprep.mubr.f32.mxu0 0.0
  %1468 = vmatmul.mubr.f32.gmra.mxu0 %v1385
  %v1469 = vpop.f32.mrf.mxu0
  %v1470 = vadd.f32 0.0, %v1469
  %v1471 = vpop.f32.mrf.mxu0
  %1472 = vmatprep.mubr.f32.mxu0 0.0
  %1473 = vmatmul.mubr.f32.gmra.mxu0 %v1388
  %v1474 = vpop.f32.mrf.mxu0
  %v1475 = vadd.f32 0.0, %v1474
  %v1476 = vpop.f32.mrf.mxu0
  %1477 = vmatprep.mubr.f32.mxu0 0.0
  %1478 = vmatmul.mubr.f32.gmra.mxu0 %v1391
  %v1479 = vpop.f32.mrf.mxu0
  %v1480 = vadd.f32 0.0, %v1479
  %v1481 = vpop.f32.mrf.mxu0
  %1482 = vmatprep.mubr.f32.mxu0 0.0
  %1483 = vmatmul.mubr.f32.gmra.mxu0 %v1394
  %v1484 = vpop.f32.mrf.mxu0
  %v1485 = vadd.f32 0.0, %v1484
  %v1486 = vpop.f32.mrf.mxu0
  %1487 = vdwg.mxu0
  %v1488 = vadd.f32 %v1173, %v1465
  %v1489 = vadd.f32 %v1174, %v1470
  %v1490 = vadd.f32 %v1175, %v1475
  %v1491 = vadd.f32 %v1176, %v1480
  %v1492 = vadd.f32 %v1177, %v1485
  %v1493 = vlaneseq
  %v1494 = vshrl.u32 %v1493, 7
  %v1495 = vsub.s32 1, %v1494
  %v1496 = vrot.slane %v46, %v1495
  %v1497 = vadd.f32 %v1488, %v1496
  %v1498 = vadd.f32 %v1489, %v1496
  %v1499 = vadd.f32 %v1490, %v1496
  %v1500 = vadd.f32 %v1491, %v1496
  %v1501 = vadd.f32 %v1492, %v1496
  %1502 = vst.msk [vmem:[%s4] sm:$0xff] %vm86, %v1497
  %1503 = vst.msk [vmem:[%s4 + $0x8] sm:$0xff] %vm86, %v1498
  %1504 = vst.msk [vmem:[%s4 + $0x10] sm:$0xff] %vm86, %v1499
  %1505 = vst.msk [vmem:[%s4 + $0x18] sm:$0xff] %vm86, %v1500
  %vm1506 = vcmask 259072
  %1507 = vst.msk [vmem:[%s4 + $0x20] sm:$0x3f] %vm1506, %v1501
  // Predicated region
  $region18: #{tpu_custom_call.1} parent=0 // pred_check
    _
  $region19: #{tpu_custom_call.1} parent=0 // pred_check_branch
    %1509 = sbr.rel (0) target = $region21
  $region20: #{tpu_custom_call.1} parent=0 // pred_region
    _
  $region21: #{tpu_custom_call.1} parent=0 // pred_fallthru
    _
  // Predicated region
  $region22: #{tpu_custom_call.1} parent=0 // pred_check
    _
  $region23: #{tpu_custom_call.1} parent=0 // pred_check_branch
    %1511 = sbr.rel (0) target = $region25
  $region24: #{tpu_custom_call.1} parent=0 // pred_region
    _
  $region25: #{tpu_custom_call.1} parent=0 // pred_fallthru
    _

</llo_original>
